<compile_context>
chip_gen: v5e
topology: v5e:2x2
jax: 0.10.0
libtpu: 0.0.40
codegen_flags: <defaults>
</compile_context>

<pallas_src>
import functools

import numpy as np
import jax
import jax.numpy as jnp
from jax.experimental import pallas as pl
from jax.experimental.pallas import tpu as pltpu

_BIG = 1e30
_ROW_SENTINEL = np.iinfo(np.int32).min + 1   # label for padded anchor rows
_COL_SENTINEL = np.iinfo(np.int32).min       # label for padded candidate columns


def _round_up(x, m):
    return (x + m - 1) // m * m


def _co_hard_triplet_kernel(e1_ref, e2_ref, e1t_ref, e2t_ref,
                            sq1r_ref, sq2r_ref, sq1c_ref, sq2c_ref,
                            tcol_ref, trow_ref, out_ref,
                            *, n_chunks, chunk, soft_margin, highest_precision):
    tm = e1_ref.shape[0]
    big = jnp.float32(_BIG)
    prec = jax.lax.Precision.HIGHEST if highest_precision else None

    e1 = e1_ref[...]                       # (TM, Dp)
    e2 = e2_ref[...]
    sq1_c = sq1c_ref[...]                  # (TM, 1)  |emb1 row|^2
    sq2_c = sq2c_ref[...]
    t_col = tcol_ref[...]                  # (TM, 1)  anchor labels

    # Hoisted broadcasts (JAX does not CSE broadcast_in_dim inside loops).
    row0 = pl.program_id(0) * tm
    row_idx = row0 + jax.lax.broadcasted_iota(jnp.int32, (tm, chunk), 0)
    col_base = jax.lax.broadcasted_iota(jnp.int32, (tm, chunk), 1)

    def chunk_start(ci):
        c0 = ci * chunk
        return c0 if isinstance(c0, int) else pl.multiple_of(c0, chunk)

    def chunk_dists(c0):
        # e*t refs already carry the -2 factor: d = |a|^2 + |b|^2 - 2 a.b
        g1 = jnp.dot(e1, e1t_ref[:, pl.ds(c0, chunk)],
                     preferred_element_type=jnp.float32, precision=prec)
        g2 = jnp.dot(e2, e2t_ref[:, pl.ds(c0, chunk)],
                     preferred_element_type=jnp.float32, precision=prec)
        d1 = sq1_c + sq1r_ref[:, pl.ds(c0, chunk)] + g1     # (TM, chunk)
        d2 = sq2_c + sq2r_ref[:, pl.ds(c0, chunk)] + g2
        t_row = trow_ref[:, pl.ds(c0, chunk)]               # (1, chunk)
        return d1, d2, t_row

    # ---- Phase 1: hardest negative per anchor (mined on the *other* embedding),
    # carried as (selection-min, loss-at-min) so VMEM stays O(TM*chunk). --------
    def mine(ci, carry):
        sel1, an1, sel2, an2 = carry
        d1, d2, t_row = chunk_dists(chunk_start(ci))
        neg = t_col != t_row        # padded cols have +BIG distance -> never min
        ds1 = jnp.where(neg, d2, big)        # mine on emb2 -> scores emb1
        ds2 = jnp.where(neg, d1, big)        # mine on emb1 -> scores emb2
        m1 = jnp.min(ds1, axis=1, keepdims=True)
        m2 = jnp.min(ds2, axis=1, keepdims=True)
        l1 = jnp.min(jnp.where(ds1 == m1, d1, big), axis=1, keepdims=True)
        l2 = jnp.min(jnp.where(ds2 == m2, d2, big), axis=1, keepdims=True)
        an1 = jnp.where(m1 < sel1, l1,
                        jnp.where(m1 > sel1, an1, jnp.minimum(an1, l1)))
        an2 = jnp.where(m2 < sel2, l2,
                        jnp.where(m2 > sel2, an2, jnp.minimum(an2, l2)))
        return jnp.minimum(sel1, m1), an1, jnp.minimum(sel2, m2), an2

    full_big = jnp.full((tm, 1), big, dtype=jnp.float32)
    init = (full_big, full_big, full_big, full_big)
    if n_chunks == 1:
        _, an1, _, an2 = mine(0, init)
    else:
        _, an1, _, an2 = jax.lax.fori_loop(0, n_chunks, mine, init)

    def per_pair(x):
        if soft_margin:
            # softplus; exp/log1p run on the EUP slot (effectively free here).
            return jnp.maximum(x, 0.0) + jnp.log1p(jnp.exp(-jnp.abs(x)))
        return jnp.maximum(x + 0.1, 0.0)

    # ---- Phase 2: loss over same-label (a < p) pairs; distances recomputed per
    # chunk (MXU has huge slack) so intermediates stay in vregs. ---------------
    def accumulate(ci, carry):
        s1, s2 = carry
        d1, d2, t_row = chunk_dists(chunk_start(ci))
        col_idx = ci * chunk + col_base
        pos = jnp.logical_and(t_col == t_row, row_idx < col_idx)
        s1 = s1 + jnp.sum(jnp.where(pos, per_pair(d1 - an1), 0.0))
        s2 = s2 + jnp.sum(jnp.where(pos, per_pair(d2 - an2), 0.0))
        return s1, s2

    zero = jnp.float32(0.0)
    if n_chunks == 1:
        s1, s2 = accumulate(0, (zero, zero))
    else:
        s1, s2 = jax.lax.fori_loop(0, n_chunks, accumulate, (zero, zero))

    # Single lane-dense (8,128) output tile: s1 on sublane 0, s2 on sublane 1.
    sub = jax.lax.broadcasted_iota(jnp.int32, out_ref.shape, 0)
    out_ref[...] = jnp.where(sub == 0, s1, jnp.where(sub == 1, s2, 0.0))


def _vmem_capacity_bytes():
    try:
        return int(pltpu.get_tpu_info().vmem_capacity_bytes)
    except Exception:
        return 64 << 20   # conservative (v7x-sized) fallback


def co_hard_mining_triplet_loss(emb1, emb2, targets, keep_rate=None,
                                soft_margin=True, size_average=True):
    """Forward of CoHardMiningTripletLoss. Returns (l1, l2, l1, l2); keep_rate unused."""
    emb1 = jnp.asarray(emb1, jnp.float32)
    emb2 = jnp.asarray(emb2, jnp.float32)
    n, d = emb1.shape

    phys_vmem = _vmem_capacity_bytes()

    # Feature dim: pad only to a sublane multiple (block == full array dim is
    # legal) so small D does not inflate the resident (Dp, N) operands.
    dp = max(_round_up(d, 8), 8)

    # Anchor row tile: >= 2 grid blocks when n > 8 (feeds both v7x TCs);
    # TM up to 256 only on the 128-MiB VMEM chips (v5e / v6e).
    max_tm = 256 if phys_vmem >= (100 << 20) else 128
    tm = 8 if n <= 8 else min(max_tm, _round_up((n + 1) // 2, 8))
    np_rows = _round_up(n, tm)
    num_blocks = np_rows // tm

    # Candidate (column) dim: chunked inside the kernel -> VMEM O(TM*chunk).
    if n <= 512:
        chunk = np_cols = _round_up(n, 8)
    else:
        chunk = 512
        np_cols = _round_up(n, chunk)
    n_chunks = np_cols // chunk

    def pad_feat(x):
        return jnp.pad(x, ((0, 0), (0, dp - d)))

    e1f = pad_feat(emb1)                                        # (n, Dp)
    e2f = pad_feat(emb2)
    e1_rows = jnp.pad(e1f, ((0, np_rows - n), (0, 0)))          # (Nr, Dp)
    e2_rows = jnp.pad(e2f, ((0, np_rows - n), (0, 0)))
    # Fold the -2 into the transposed operand (saves a (TM,chunk) mul in-kernel).
    e1t = (-2.0 * jnp.pad(e1f, ((0, np_cols - n), (0, 0)))).T   # (Dp, Nc)
    e2t = (-2.0 * jnp.pad(e2f, ((0, np_cols - n), (0, 0)))).T

    sq1 = jnp.sum(e1f * e1f, axis=1)
    sq2 = jnp.sum(e2f * e2f, axis=1)
    sq1_col = jnp.pad(sq1, (0, np_rows - n)).reshape(np_rows, 1)
    sq2_col = jnp.pad(sq2, (0, np_rows - n)).reshape(np_rows, 1)
    # Padded columns get +BIG so they can never be the hardest negative.
    sq1_row = jnp.pad(sq1, (0, np_cols - n), constant_values=_BIG).reshape(1, np_cols)
    sq2_row = jnp.pad(sq2, (0, np_cols - n), constant_values=_BIG).reshape(1, np_cols)

    t = jnp.asarray(targets).astype(jnp.int32).reshape(n)
    # Distinct sentinels: padded rows never form positives; padded columns are
    # neither positives nor (thanks to +BIG) viable negatives -> no in-kernel
    # validity masks needed.
    t_col = jnp.pad(t, (0, np_rows - n), constant_values=_ROW_SENTINEL).reshape(np_rows, 1)
    t_row = jnp.pad(t, (0, np_cols - n), constant_values=_COL_SENTINEL).reshape(1, np_cols)

    # VMEM budget: single-buffered resident (Dp,Nc) operands + double-buffered
    # row blocks + ~16 live (TM,chunk) f32 temporaries, with headroom below the
    # physical capacity (~56 MiB on v7x, ~112 MiB on v5e/v6e).
    est = 4 * (2 * dp * np_cols + 3 * np_cols
               + 4 * (2 * tm * dp + 3 * tm)
               + 16 * tm * chunk + 2 * 8 * 128)
    cap = (phys_vmem // 8) * 7
    vmem_limit = int(min(max(est + (4 << 20), 32 << 20), cap))

    def run(single_buffer, highest_precision):
        kernel = functools.partial(
            _co_hard_triplet_kernel, n_chunks=n_chunks, chunk=chunk,
            soft_margin=soft_margin, highest_precision=highest_precision)
        inv = {"pipeline_mode": pl.Buffered(1)} if single_buffer else {}
        return pl.pallas_call(
            kernel,
            out_shape=jax.ShapeDtypeStruct((num_blocks * 8, 128), jnp.float32),
            grid=(num_blocks,),
            in_specs=[
                pl.BlockSpec((tm, dp), lambda g: (g, 0)),                    # emb1 rows
                pl.BlockSpec((tm, dp), lambda g: (g, 0)),                    # emb2 rows
                pl.BlockSpec((dp, np_cols), lambda g: (0, 0), **inv),        # -2*emb1^T
                pl.BlockSpec((dp, np_cols), lambda g: (0, 0), **inv),        # -2*emb2^T
                pl.BlockSpec((1, np_cols), lambda g: (0, 0), **inv),         # |emb1|^2 cols
                pl.BlockSpec((1, np_cols), lambda g: (0, 0), **inv),         # |emb2|^2 cols
                pl.BlockSpec((tm, 1), lambda g: (g, 0)),                     # |emb1|^2 rows
                pl.BlockSpec((tm, 1), lambda g: (g, 0)),                     # |emb2|^2 rows
                pl.BlockSpec((tm, 1), lambda g: (g, 0)),                     # labels (rows)
                pl.BlockSpec((1, np_cols), lambda g: (0, 0), **inv),         # labels (cols)
            ],
            out_specs=pl.BlockSpec((8, 128), lambda g: (g, 0)),
            compiler_params=pltpu.CompilerParams(
                dimension_semantics=("parallel",),
                vmem_limit_bytes=vmem_limit),
        )(e1_rows, e2_rows, e1t, e2t, sq1_row, sq2_row,
          sq1_col, sq2_col, t_col, t_row)

    try:
        partials = run(True, True)
    except Exception:
        # Graceful degradation if this jax build rejects pl.Buffered(1) or
        # HIGHEST dot precision in the Mosaic lowering.
        partials = run(False, False)

    lp = partials.reshape(num_blocks, 8, 128)
    s1 = jnp.sum(lp[:, 0, 0])
    s2 = jnp.sum(lp[:, 1, 0])

    if size_average:
        # Positive-pair count computed from labels in the wrapper (cheap XLA op).
        idx = jnp.arange(n)
        cnt = jnp.sum((t[:, None] == t[None, :]) &
                      (idx[:, None] < idx[None, :])).astype(jnp.float32)
        cnt = jnp.maximum(cnt, 1.0)   # guard degenerate batches with no pairs
        s1 = s1 / cnt
        s2 = s2 / cnt
    return s1, s2, s1, s2


def _reference(e1, e2, t, soft_margin=True, size_average=True):
    e1 = np.asarray(e1, np.float64)
    e2 = np.asarray(e2, np.float64)
    t = np.asarray(t)
    n = e1.shape[0]

    def pd(e):
        g = e @ e.T
        sq = np.diag(g)
        return sq[:, None] + sq[None, :] - 2.0 * g

    d1, d2 = pd(e1), pd(e2)
    neg = t[:, None] != t[None, :]
    pos = (t[:, None] == t[None, :]) & (np.arange(n)[:, None] < np.arange(n)[None, :])

    def hard(dsel):
        return np.argmin(np.where(neg, dsel, 1e30), axis=1)

    an1 = d1[np.arange(n), hard(d2)][:, None]
    an2 = d2[np.arange(n), hard(d1)][:, None]

    def sp(x):
        return np.maximum(x, 0.0) + np.log1p(np.exp(-np.abs(x)))

    if soft_margin:
        l1, l2 = sp(d1 - an1), sp(d2 - an2)
    else:
        l1, l2 = np.maximum(d1 - an1 + 0.1, 0.0), np.maximum(d2 - an2 + 0.1, 0.0)
    if size_average:
        return l1[pos].mean(), l2[pos].mean()
    return l1[pos].sum(), l2[pos].sum()


if __name__ == "__main__":
    key = jax.random.PRNGKey(0)
    k1, k2 = jax.random.split(key)
    N, D = 8, 32                                    # batch=8, embedding dim=32
    emb1 = jax.random.normal(k1, (N, D), dtype=jnp.float32)
    emb2 = jax.random.normal(k2, (N, D), dtype=jnp.float32)
    targets = jnp.array([0, 0, 0, 0, 1, 1, 1, 1], dtype=jnp.int32)

    # soft-margin / mean
    out = co_hard_mining_triplet_loss(emb1, emb2, targets, keep_rate=1.0,
                                      soft_margin=True, size_average=True)
    out = jax.block_until_ready(out)
    r1, r2 = _reference(np.asarray(emb1), np.asarray(emb2), np.asarray(targets),
                        soft_margin=True, size_average=True)
    assert np.allclose(float(out[0]), r1, rtol=5e-2, atol=5e-2), (float(out[0]), r1)
    assert np.allclose(float(out[1]), r2, rtol=5e-2, atol=5e-2), (float(out[1]), r2)
    assert float(out[2]) == float(out[0]) and float(out[3]) == float(out[1])

    # hard-margin / sum
    out2 = co_hard_mining_triplet_loss(emb1, emb2, targets, keep_rate=1.0,
                                       soft_margin=False, size_average=False)
    out2 = jax.block_until_ready(out2)
    q1, q2 = _reference(np.asarray(emb1), np.asarray(emb2), np.asarray(targets),
                        soft_margin=False, size_average=False)
    assert np.allclose(float(out2[0]), q1, rtol=5e-2, atol=5e-1), (float(out2[0]), q1)
    assert np.allclose(float(out2[1]), q2, rtol=5e-2, atol=5e-1), (float(out2[1]), q2)

    print("KERNEL_OK")
</pallas_src>

<mosaic_0001>
module attributes {stable_mosaic.version = 11 : i64} {
  func.func @_co_hard_triplet_kernel(%arg0: i32, %arg1: memref<8x32xf32, #tpu.memory_space<vmem>>, %arg2: memref<8x32xf32, #tpu.memory_space<vmem>>, %arg3: memref<32x8xf32, #tpu.memory_space<vmem>>, %arg4: memref<32x8xf32, #tpu.memory_space<vmem>>, %arg5: memref<1x8xf32, #tpu.memory_space<vmem>>, %arg6: memref<1x8xf32, #tpu.memory_space<vmem>>, %arg7: memref<8x1xf32, #tpu.memory_space<vmem>>, %arg8: memref<8x1xf32, #tpu.memory_space<vmem>>, %arg9: memref<8x1xi32, #tpu.memory_space<vmem>>, %arg10: memref<1x8xi32, #tpu.memory_space<vmem>>, %arg11: memref<8x128xf32, #tpu.memory_space<vmem>>) attributes {dimension_semantics = [#tpu.dimension_semantics<parallel>], iteration_bounds = array<i64: 1>, scalar_prefetch = 0 : i64, scratch_operands = 0 : i64, tpu.core_type = #tpu.core_type<tc>, window_params = [{transform_indices = @transform_0, window_bounds = array<i64: 8, 32>}, {transform_indices = @transform_1, window_bounds = array<i64: 8, 32>}, {pipeline_mode = #tpu.pipeline_mode<synchronous>, transform_indices = @transform_2, window_bounds = array<i64: 32, 8>}, {pipeline_mode = #tpu.pipeline_mode<synchronous>, transform_indices = @transform_3, window_bounds = array<i64: 32, 8>}, {pipeline_mode = #tpu.pipeline_mode<synchronous>, transform_indices = @transform_4, window_bounds = array<i64: 1, 8>}, {pipeline_mode = #tpu.pipeline_mode<synchronous>, transform_indices = @transform_5, window_bounds = array<i64: 1, 8>}, {transform_indices = @transform_6, window_bounds = array<i64: 8, 1>}, {transform_indices = @transform_7, window_bounds = array<i64: 8, 1>}, {transform_indices = @transform_8, window_bounds = array<i64: 8, 1>}, {pipeline_mode = #tpu.pipeline_mode<synchronous>, transform_indices = @transform_9, window_bounds = array<i64: 1, 8>}, {transform_indices = @transform_10, window_bounds = array<i64: 8, 128>}]} {
    %c0 = arith.constant 0 : index
    %c0_0 = arith.constant 0 : index
    %0 = vector.load %arg1[%c0, %c0_0] : memref<8x32xf32, #tpu.memory_space<vmem>>, vector<8x32xf32>
    %c0_1 = arith.constant 0 : index
    %c0_2 = arith.constant 0 : index
    %1 = vector.load %arg2[%c0_1, %c0_2] : memref<8x32xf32, #tpu.memory_space<vmem>>, vector<8x32xf32>
    %c0_3 = arith.constant 0 : index
    %c0_4 = arith.constant 0 : index
    %2 = vector.load %arg7[%c0_3, %c0_4] : memref<8x1xf32, #tpu.memory_space<vmem>>, vector<8x1xf32>
    %c0_5 = arith.constant 0 : index
    %c0_6 = arith.constant 0 : index
    %3 = vector.load %arg8[%c0_5, %c0_6] : memref<8x1xf32, #tpu.memory_space<vmem>>, vector<8x1xf32>
    %c0_7 = arith.constant 0 : index
    %c0_8 = arith.constant 0 : index
    %4 = vector.load %arg9[%c0_7, %c0_8] : memref<8x1xi32, #tpu.memory_space<vmem>>, vector<8x1xi32>
    %c8_i32 = arith.constant 8 : i32
    %5 = arith.muli %arg0, %c8_i32 : i32
    %6 = tpu.iota {dimensions = array<i32: 0>} : vector<8x8xi32>
    %7 = vector.broadcast %5 : i32 to vector<8x8xi32>
    %8 = arith.addi %7, %6 : vector<8x8xi32>
    %9 = tpu.iota {dimensions = array<i32: 1>} : vector<8x8xi32>
    %cst = arith.constant 1.000000e+30 : f32
    %10 = vector.broadcast %cst : f32 to vector<8x1xf32>
    %c0_9 = arith.constant 0 : index
    %c0_10 = arith.constant 0 : index
    %11 = vector.load %arg3[%c0_9, %c0_10] : memref<32x8xf32, #tpu.memory_space<vmem>>, vector<32x8xf32>
    %cst_11 = arith.constant dense<0.000000e+00> : vector<8x8xf32>
    %12 = tpu.matmul %0, %11, %cst_11 {dimension_numbers = #tpu.dot_dimension_numbers<[1], [0], [0], [1], [0, 0, 1, 1], [], []>, precision = #tpu.contract_precision<fp32>} : vector<8x32xf32>, vector<32x8xf32>, vector<8x8xf32> -> vector<8x8xf32>
    %c0_12 = arith.constant 0 : index
    %c0_13 = arith.constant 0 : index
    %13 = vector.load %arg4[%c0_12, %c0_13] : memref<32x8xf32, #tpu.memory_space<vmem>>, vector<32x8xf32>
    %cst_14 = arith.constant dense<0.000000e+00> : vector<8x8xf32>
    %14 = tpu.matmul %1, %13, %cst_14 {dimension_numbers = #tpu.dot_dimension_numbers<[1], [0], [0], [1], [0, 0, 1, 1], [], []>, precision = #tpu.contract_precision<fp32>} : vector<8x32xf32>, vector<32x8xf32>, vector<8x8xf32> -> vector<8x8xf32>
    %c0_15 = arith.constant 0 : index
    %c0_16 = arith.constant 0 : index
    %15 = vector.load %arg5[%c0_15, %c0_16] : memref<1x8xf32, #tpu.memory_space<vmem>>, vector<1x8xf32>
    %16 = vector.broadcast %2 : vector<8x1xf32> to vector<8x8xf32>
    %17 = vector.broadcast %15 : vector<1x8xf32> to vector<8x8xf32>
    %18 = arith.addf %16, %17 : vector<8x8xf32>
    %19 = arith.addf %18, %12 : vector<8x8xf32>
    %c0_17 = arith.constant 0 : index
    %c0_18 = arith.constant 0 : index
    %20 = vector.load %arg6[%c0_17, %c0_18] : memref<1x8xf32, #tpu.memory_space<vmem>>, vector<1x8xf32>
    %21 = vector.broadcast %3 : vector<8x1xf32> to vector<8x8xf32>
    %22 = vector.broadcast %20 : vector<1x8xf32> to vector<8x8xf32>
    %23 = arith.addf %21, %22 : vector<8x8xf32>
    %24 = arith.addf %23, %14 : vector<8x8xf32>
    %c0_19 = arith.constant 0 : index
    %c0_20 = arith.constant 0 : index
    %25 = vector.load %arg10[%c0_19, %c0_20] : memref<1x8xi32, #tpu.memory_space<vmem>>, vector<1x8xi32>
    %26 = vector.broadcast %4 : vector<8x1xi32> to vector<8x8xi32>
    %27 = vector.broadcast %25 : vector<1x8xi32> to vector<8x8xi32>
    %28 = arith.cmpi ne, %26, %27 : vector<8x8xi32>
    %cst_21 = arith.constant 1.000000e+30 : f32
    %29 = vector.broadcast %cst_21 : f32 to vector<8x8xf32>
    %30 = arith.select %28, %24, %29 : vector<8x8xi1>, vector<8x8xf32>
    %cst_22 = arith.constant 1.000000e+30 : f32
    %31 = vector.broadcast %cst_22 : f32 to vector<8x8xf32>
    %32 = arith.select %28, %19, %31 : vector<8x8xi1>, vector<8x8xf32>
    %cst_23 = arith.constant dense<0x7F800000> : vector<8xf32>
    %33 = vector.multi_reduction <minimumf>, %30, %cst_23 [1] : vector<8x8xf32> to vector<8xf32>
    %34 = vector.shape_cast %33 : vector<8xf32> to vector<8x1xf32>
    %cst_24 = arith.constant dense<0x7F800000> : vector<8xf32>
    %35 = vector.multi_reduction <minimumf>, %32, %cst_24 [1] : vector<8x8xf32> to vector<8xf32>
    %36 = vector.shape_cast %35 : vector<8xf32> to vector<8x1xf32>
    %37 = vector.broadcast %34 : vector<8x1xf32> to vector<8x8xf32>
    %38 = arith.cmpf oeq, %30, %37 : vector<8x8xf32>
    %cst_25 = arith.constant 1.000000e+30 : f32
    %39 = vector.broadcast %cst_25 : f32 to vector<8x8xf32>
    %40 = arith.select %38, %19, %39 : vector<8x8xi1>, vector<8x8xf32>
    %cst_26 = arith.constant dense<0x7F800000> : vector<8xf32>
    %41 = vector.multi_reduction <minimumf>, %40, %cst_26 [1] : vector<8x8xf32> to vector<8xf32>
    %42 = vector.shape_cast %41 : vector<8xf32> to vector<8x1xf32>
    %43 = vector.broadcast %36 : vector<8x1xf32> to vector<8x8xf32>
    %44 = arith.cmpf oeq, %32, %43 : vector<8x8xf32>
    %cst_27 = arith.constant 1.000000e+30 : f32
    %45 = vector.broadcast %cst_27 : f32 to vector<8x8xf32>
    %46 = arith.select %44, %24, %45 : vector<8x8xi1>, vector<8x8xf32>
    %cst_28 = arith.constant dense<0x7F800000> : vector<8xf32>
    %47 = vector.multi_reduction <minimumf>, %46, %cst_28 [1] : vector<8x8xf32> to vector<8xf32>
    %48 = vector.shape_cast %47 : vector<8xf32> to vector<8x1xf32>
    %49 = arith.cmpf olt, %34, %10 : vector<8x1xf32>
    %50 = arith.cmpf ogt, %34, %10 : vector<8x1xf32>
    %51 = arith.minimumf %10, %42 : vector<8x1xf32>
    %52 = arith.select %50, %10, %51 : vector<8x1xi1>, vector<8x1xf32>
    %53 = arith.select %49, %42, %52 : vector<8x1xi1>, vector<8x1xf32>
    %54 = arith.cmpf olt, %36, %10 : vector<8x1xf32>
    %55 = arith.cmpf ogt, %36, %10 : vector<8x1xf32>
    %56 = arith.minimumf %10, %48 : vector<8x1xf32>
    %57 = arith.select %55, %10, %56 : vector<8x1xi1>, vector<8x1xf32>
    %58 = arith.select %54, %48, %57 : vector<8x1xi1>, vector<8x1xf32>
    %c0_29 = arith.constant 0 : index
    %c0_30 = arith.constant 0 : index
    %59 = vector.load %arg3[%c0_29, %c0_30] : memref<32x8xf32, #tpu.memory_space<vmem>>, vector<32x8xf32>
    %cst_31 = arith.constant dense<0.000000e+00> : vector<8x8xf32>
    %60 = tpu.matmul %0, %59, %cst_31 {dimension_numbers = #tpu.dot_dimension_numbers<[1], [0], [0], [1], [0, 0, 1, 1], [], []>, precision = #tpu.contract_precision<fp32>} : vector<8x32xf32>, vector<32x8xf32>, vector<8x8xf32> -> vector<8x8xf32>
    %c0_32 = arith.constant 0 : index
    %c0_33 = arith.constant 0 : index
    %61 = vector.load %arg4[%c0_32, %c0_33] : memref<32x8xf32, #tpu.memory_space<vmem>>, vector<32x8xf32>
    %cst_34 = arith.constant dense<0.000000e+00> : vector<8x8xf32>
    %62 = tpu.matmul %1, %61, %cst_34 {dimension_numbers = #tpu.dot_dimension_numbers<[1], [0], [0], [1], [0, 0, 1, 1], [], []>, precision = #tpu.contract_precision<fp32>} : vector<8x32xf32>, vector<32x8xf32>, vector<8x8xf32> -> vector<8x8xf32>
    %c0_35 = arith.constant 0 : index
    %c0_36 = arith.constant 0 : index
    %63 = vector.load %arg5[%c0_35, %c0_36] : memref<1x8xf32, #tpu.memory_space<vmem>>, vector<1x8xf32>
    %64 = vector.broadcast %2 : vector<8x1xf32> to vector<8x8xf32>
    %65 = vector.broadcast %63 : vector<1x8xf32> to vector<8x8xf32>
    %66 = arith.addf %64, %65 : vector<8x8xf32>
    %67 = arith.addf %66, %60 : vector<8x8xf32>
    %c0_37 = arith.constant 0 : index
    %c0_38 = arith.constant 0 : index
    %68 = vector.load %arg6[%c0_37, %c0_38] : memref<1x8xf32, #tpu.memory_space<vmem>>, vector<1x8xf32>
    %69 = vector.broadcast %3 : vector<8x1xf32> to vector<8x8xf32>
    %70 = vector.broadcast %68 : vector<1x8xf32> to vector<8x8xf32>
    %71 = arith.addf %69, %70 : vector<8x8xf32>
    %72 = arith.addf %71, %62 : vector<8x8xf32>
    %c0_39 = arith.constant 0 : index
    %c0_40 = arith.constant 0 : index
    %73 = vector.load %arg10[%c0_39, %c0_40] : memref<1x8xi32, #tpu.memory_space<vmem>>, vector<1x8xi32>
    %c0_i32 = arith.constant 0 : i32
    %74 = vector.broadcast %c0_i32 : i32 to vector<8x8xi32>
    %75 = arith.addi %74, %9 : vector<8x8xi32>
    %76 = vector.broadcast %4 : vector<8x1xi32> to vector<8x8xi32>
    %77 = vector.broadcast %73 : vector<1x8xi32> to vector<8x8xi32>
    %78 = arith.cmpi eq, %76, %77 : vector<8x8xi32>
    %79 = arith.cmpi slt, %8, %75 : vector<8x8xi32>
    %80 = arith.andi %78, %79 : vector<8x8xi1>
    %81 = vector.broadcast %53 : vector<8x1xf32> to vector<8x8xf32>
    %82 = arith.subf %67, %81 : vector<8x8xf32>
    %cst_41 = arith.constant 0.000000e+00 : f32
    %83 = vector.broadcast %cst_41 : f32 to vector<8x8xf32>
    %84 = arith.maximumf %82, %83 : vector<8x8xf32>
    %85 = math.absf %82 : vector<8x8xf32>
    %cst_42 = arith.constant 0.000000e+00 : f32
    %86 = vector.broadcast %cst_42 : f32 to vector<8x8xf32>
    %87 = arith.subf %86, %85 : vector<8x8xf32>
    %88 = math.exp %87 : vector<8x8xf32>
    %89 = math.log1p %88 : vector<8x8xf32>
    %90 = arith.addf %84, %89 : vector<8x8xf32>
    %cst_43 = arith.constant 0.000000e+00 : f32
    %91 = vector.broadcast %cst_43 : f32 to vector<8x8xf32>
    %92 = arith.select %80, %90, %91 : vector<8x8xi1>, vector<8x8xf32>
    %93 = vector.shape_cast %92 : vector<8x8xf32> to vector<1x8x8xf32>
    %cst_44 = arith.constant dense<0.000000e+00> : vector<1xf32>
    %94 = vector.multi_reduction <add>, %93, %cst_44 [1, 2] : vector<1x8x8xf32> to vector<1xf32>
    %95 = vector.shape_cast %94 : vector<1xf32> to vector<1x1x1xf32>
    %96 = vector.extract %95[0, 0, 0] : f32 from vector<1x1x1xf32>
    %cst_45 = arith.constant 0.000000e+00 : f32
    %97 = arith.addf %cst_45, %96 : f32
    %98 = vector.broadcast %58 : vector<8x1xf32> to vector<8x8xf32>
    %99 = arith.subf %72, %98 : vector<8x8xf32>
    %cst_46 = arith.constant 0.000000e+00 : f32
    %100 = vector.broadcast %cst_46 : f32 to vector<8x8xf32>
    %101 = arith.maximumf %99, %100 : vector<8x8xf32>
    %102 = math.absf %99 : vector<8x8xf32>
    %cst_47 = arith.constant 0.000000e+00 : f32
    %103 = vector.broadcast %cst_47 : f32 to vector<8x8xf32>
    %104 = arith.subf %103, %102 : vector<8x8xf32>
    %105 = math.exp %104 : vector<8x8xf32>
    %106 = math.log1p %105 : vector<8x8xf32>
    %107 = arith.addf %101, %106 : vector<8x8xf32>
    %cst_48 = arith.constant 0.000000e+00 : f32
    %108 = vector.broadcast %cst_48 : f32 to vector<8x8xf32>
    %109 = arith.select %80, %107, %108 : vector<8x8xi1>, vector<8x8xf32>
    %110 = vector.shape_cast %109 : vector<8x8xf32> to vector<1x8x8xf32>
    %cst_49 = arith.constant dense<0.000000e+00> : vector<1xf32>
    %111 = vector.multi_reduction <add>, %110, %cst_49 [1, 2] : vector<1x8x8xf32> to vector<1xf32>
    %112 = vector.shape_cast %111 : vector<1xf32> to vector<1x1x1xf32>
    %113 = vector.extract %112[0, 0, 0] : f32 from vector<1x1x1xf32>
    %cst_50 = arith.constant 0.000000e+00 : f32
    %114 = arith.addf %cst_50, %113 : f32
    %115 = tpu.iota {dimensions = array<i32: 0>} : vector<8x128xi32>
    %c0_i32_51 = arith.constant 0 : i32
    %116 = vector.broadcast %c0_i32_51 : i32 to vector<8x128xi32>
    %117 = arith.cmpi eq, %115, %116 : vector<8x128xi32>
    %c1_i32 = arith.constant 1 : i32
    %118 = vector.broadcast %c1_i32 : i32 to vector<8x128xi32>
    %119 = arith.cmpi eq, %115, %118 : vector<8x128xi32>
    %cst_52 = arith.constant 0.000000e+00 : f32
    %120 = vector.broadcast %114 : f32 to vector<8x128xf32>
    %121 = vector.broadcast %cst_52 : f32 to vector<8x128xf32>
    %122 = arith.select %119, %120, %121 : vector<8x128xi1>, vector<8x128xf32>
    %123 = vector.broadcast %97 : f32 to vector<8x128xf32>
    %124 = arith.select %117, %123, %122 : vector<8x128xi1>, vector<8x128xf32>
    %c0_53 = arith.constant 0 : index
    %c0_54 = arith.constant 0 : index
    %125 = vector.load %arg11[%c0_53, %c0_54] : memref<8x128xf32, #tpu.memory_space<vmem>>, vector<8x128xf32>
    tpu.vector_store %arg11[%c0_53, %c0_54], %124 {strides = array<i32>} : memref<8x128xf32, #tpu.memory_space<vmem>>, vector<8x128xf32>,
    return
  }
  func.func @transform_0(%arg0: i32) -> (i32, i32) {
    %c0_i32 = arith.constant 0 : i32
    %c0_i32_0 = arith.constant 0 : i32
    return %arg0, %c0_i32 : i32, i32
  }
  func.func @transform_1(%arg0: i32) -> (i32, i32) {
    %c0_i32 = arith.constant 0 : i32
    %c0_i32_0 = arith.constant 0 : i32
    return %arg0, %c0_i32 : i32, i32
  }
  func.func @transform_2(%arg0: i32) -> (i32, i32) {
    %c0_i32 = arith.constant 0 : i32
    %c0_i32_0 = arith.constant 0 : i32
    %c0_i32_1 = arith.constant 0 : i32
    return %c0_i32, %c0_i32_0 : i32, i32
  }
  func.func @transform_3(%arg0: i32) -> (i32, i32) {
    %c0_i32 = arith.constant 0 : i32
    %c0_i32_0 = arith.constant 0 : i32
    %c0_i32_1 = arith.constant 0 : i32
    return %c0_i32, %c0_i32_0 : i32, i32
  }
  func.func @transform_4(%arg0: i32) -> (i32, i32) {
    %c0_i32 = arith.constant 0 : i32
    %c0_i32_0 = arith.constant 0 : i32
    %c0_i32_1 = arith.constant 0 : i32
    return %c0_i32, %c0_i32_0 : i32, i32
  }
  func.func @transform_5(%arg0: i32) -> (i32, i32) {
    %c0_i32 = arith.constant 0 : i32
    %c0_i32_0 = arith.constant 0 : i32
    %c0_i32_1 = arith.constant 0 : i32
    return %c0_i32, %c0_i32_0 : i32, i32
  }
  func.func @transform_6(%arg0: i32) -> (i32, i32) {
    %c0_i32 = arith.constant 0 : i32
    %c0_i32_0 = arith.constant 0 : i32
    return %arg0, %c0_i32 : i32, i32
  }
  func.func @transform_7(%arg0: i32) -> (i32, i32) {
    %c0_i32 = arith.constant 0 : i32
    %c0_i32_0 = arith.constant 0 : i32
    return %arg0, %c0_i32 : i32, i32
  }
  func.func @transform_8(%arg0: i32) -> (i32, i32) {
    %c0_i32 = arith.constant 0 : i32
    %c0_i32_0 = arith.constant 0 : i32
    return %arg0, %c0_i32 : i32, i32
  }
  func.func @transform_9(%arg0: i32) -> (i32, i32) {
    %c0_i32 = arith.constant 0 : i32
    %c0_i32_0 = arith.constant 0 : i32
    %c0_i32_1 = arith.constant 0 : i32
    return %c0_i32, %c0_i32_0 : i32, i32
  }
  func.func @transform_10(%arg0: i32) -> (i32, i32) {
    %c0_i32 = arith.constant 0 : i32
    %c0_i32_0 = arith.constant 0 : i32
    return %arg0, %c0_i32 : i32, i32
  }
}

module attributes {stable_mosaic.version = 11 : i64} {
  func.func @_co_hard_triplet_kernel(%arg0: i32, %arg1: memref<8x32xf32, #tpu.memory_space<vmem>>, %arg2: memref<8x32xf32, #tpu.memory_space<vmem>>, %arg3: memref<32x8xf32, #tpu.memory_space<vmem>>, %arg4: memref<32x8xf32, #tpu.memory_space<vmem>>, %arg5: memref<1x8xf32, #tpu.memory_space<vmem>>, %arg6: memref<1x8xf32, #tpu.memory_space<vmem>>, %arg7: memref<8x1xf32, #tpu.memory_space<vmem>>, %arg8: memref<8x1xf32, #tpu.memory_space<vmem>>, %arg9: memref<8x1xi32, #tpu.memory_space<vmem>>, %arg10: memref<1x8xi32, #tpu.memory_space<vmem>>, %arg11: memref<8x128xf32, #tpu.memory_space<vmem>>) attributes {dimension_semantics = [#tpu.dimension_semantics<parallel>], iteration_bounds = array<i64: 1>, scalar_prefetch = 0 : i64, scratch_operands = 0 : i64, tpu.core_type = #tpu.core_type<tc>, window_params = [{transform_indices = @transform_0, window_bounds = array<i64: 8, 32>}, {transform_indices = @transform_1, window_bounds = array<i64: 8, 32>}, {pipeline_mode = #tpu.pipeline_mode<synchronous>, transform_indices = @transform_2, window_bounds = array<i64: 32, 8>}, {pipeline_mode = #tpu.pipeline_mode<synchronous>, transform_indices = @transform_3, window_bounds = array<i64: 32, 8>}, {pipeline_mode = #tpu.pipeline_mode<synchronous>, transform_indices = @transform_4, window_bounds = array<i64: 1, 8>}, {pipeline_mode = #tpu.pipeline_mode<synchronous>, transform_indices = @transform_5, window_bounds = array<i64: 1, 8>}, {transform_indices = @transform_6, window_bounds = array<i64: 8, 1>}, {transform_indices = @transform_7, window_bounds = array<i64: 8, 1>}, {transform_indices = @transform_8, window_bounds = array<i64: 8, 1>}, {pipeline_mode = #tpu.pipeline_mode<synchronous>, transform_indices = @transform_9, window_bounds = array<i64: 1, 8>}, {transform_indices = @transform_10, window_bounds = array<i64: 8, 128>}]} {
    %c0 = arith.constant 0 : index
    %c0_0 = arith.constant 0 : index
    %0 = vector.load %arg1[%c0, %c0_0] : memref<8x32xf32, #tpu.memory_space<vmem>>, vector<8x32xf32>
    %c0_1 = arith.constant 0 : index
    %c0_2 = arith.constant 0 : index
    %1 = vector.load %arg2[%c0_1, %c0_2] : memref<8x32xf32, #tpu.memory_space<vmem>>, vector<8x32xf32>
    %c0_3 = arith.constant 0 : index
    %c0_4 = arith.constant 0 : index
    %2 = vector.load %arg7[%c0_3, %c0_4] : memref<8x1xf32, #tpu.memory_space<vmem>>, vector<8x1xf32>
    %c0_5 = arith.constant 0 : index
    %c0_6 = arith.constant 0 : index
    %3 = vector.load %arg8[%c0_5, %c0_6] : memref<8x1xf32, #tpu.memory_space<vmem>>, vector<8x1xf32>
    %c0_7 = arith.constant 0 : index
    %c0_8 = arith.constant 0 : index
    %4 = vector.load %arg9[%c0_7, %c0_8] : memref<8x1xi32, #tpu.memory_space<vmem>>, vector<8x1xi32>
    %c8_i32 = arith.constant 8 : i32
    %5 = arith.muli %arg0, %c8_i32 : i32
    %6 = tpu.iota {dimensions = array<i32: 0>} : vector<8x8xi32>
    %7 = vector.broadcast %5 : i32 to vector<8x8xi32>
    %8 = arith.addi %7, %6 : vector<8x8xi32>
    %9 = tpu.iota {dimensions = array<i32: 1>} : vector<8x8xi32>
    %cst = arith.constant 1.000000e+30 : f32
    %10 = vector.broadcast %cst : f32 to vector<8x1xf32>
    %c0_9 = arith.constant 0 : index
    %c0_10 = arith.constant 0 : index
    %11 = vector.load %arg3[%c0_9, %c0_10] : memref<32x8xf32, #tpu.memory_space<vmem>>, vector<32x8xf32>
    %cst_11 = arith.constant dense<0.000000e+00> : vector<8x8xf32>
    %12 = tpu.matmul %0, %11, %cst_11 {dimension_numbers = #tpu.dot_dimension_numbers<[1], [0], [0], [1], [0, 0, 1, 1], [], []>} : vector<8x32xf32>, vector<32x8xf32>, vector<8x8xf32> -> vector<8x8xf32>
    %c0_12 = arith.constant 0 : index
    %c0_13 = arith.constant 0 : index
    %13 = vector.load %arg4[%c0_12, %c0_13] : memref<32x8xf32, #tpu.memory_space<vmem>>, vector<32x8xf32>
    %cst_14 = arith.constant dense<0.000000e+00> : vector<8x8xf32>
    %14 = tpu.matmul %1, %13, %cst_14 {dimension_numbers = #tpu.dot_dimension_numbers<[1], [0], [0], [1], [0, 0, 1, 1], [], []>} : vector<8x32xf32>, vector<32x8xf32>, vector<8x8xf32> -> vector<8x8xf32>
    %c0_15 = arith.constant 0 : index
    %c0_16 = arith.constant 0 : index
    %15 = vector.load %arg5[%c0_15, %c0_16] : memref<1x8xf32, #tpu.memory_space<vmem>>, vector<1x8xf32>
    %16 = vector.broadcast %2 : vector<8x1xf32> to vector<8x8xf32>
    %17 = vector.broadcast %15 : vector<1x8xf32> to vector<8x8xf32>
    %18 = arith.addf %16, %17 : vector<8x8xf32>
    %19 = arith.addf %18, %12 : vector<8x8xf32>
    %c0_17 = arith.constant 0 : index
    %c0_18 = arith.constant 0 : index
    %20 = vector.load %arg6[%c0_17, %c0_18] : memref<1x8xf32, #tpu.memory_space<vmem>>, vector<1x8xf32>
    %21 = vector.broadcast %3 : vector<8x1xf32> to vector<8x8xf32>
    %22 = vector.broadcast %20 : vector<1x8xf32> to vector<8x8xf32>
    %23 = arith.addf %21, %22 : vector<8x8xf32>
    %24 = arith.addf %23, %14 : vector<8x8xf32>
    %c0_19 = arith.constant 0 : index
    %c0_20 = arith.constant 0 : index
    %25 = vector.load %arg10[%c0_19, %c0_20] : memref<1x8xi32, #tpu.memory_space<vmem>>, vector<1x8xi32>
    %26 = vector.broadcast %4 : vector<8x1xi32> to vector<8x8xi32>
    %27 = vector.broadcast %25 : vector<1x8xi32> to vector<8x8xi32>
    %28 = arith.cmpi ne, %26, %27 : vector<8x8xi32>
    %cst_21 = arith.constant 1.000000e+30 : f32
    %29 = vector.broadcast %cst_21 : f32 to vector<8x8xf32>
    %30 = arith.select %28, %24, %29 : vector<8x8xi1>, vector<8x8xf32>
    %cst_22 = arith.constant 1.000000e+30 : f32
    %31 = vector.broadcast %cst_22 : f32 to vector<8x8xf32>
    %32 = arith.select %28, %19, %31 : vector<8x8xi1>, vector<8x8xf32>
    %cst_23 = arith.constant dense<0x7F800000> : vector<8xf32>
    %33 = vector.multi_reduction <minimumf>, %30, %cst_23 [1] : vector<8x8xf32> to vector<8xf32>
    %34 = vector.shape_cast %33 : vector<8xf32> to vector<8x1xf32>
    %cst_24 = arith.constant dense<0x7F800000> : vector<8xf32>
    %35 = vector.multi_reduction <minimumf>, %32, %cst_24 [1] : vector<8x8xf32> to vector<8xf32>
    %36 = vector.shape_cast %35 : vector<8xf32> to vector<8x1xf32>
    %37 = vector.broadcast %34 : vector<8x1xf32> to vector<8x8xf32>
    %38 = arith.cmpf oeq, %30, %37 : vector<8x8xf32>
    %cst_25 = arith.constant 1.000000e+30 : f32
    %39 = vector.broadcast %cst_25 : f32 to vector<8x8xf32>
    %40 = arith.select %38, %19, %39 : vector<8x8xi1>, vector<8x8xf32>
    %cst_26 = arith.constant dense<0x7F800000> : vector<8xf32>
    %41 = vector.multi_reduction <minimumf>, %40, %cst_26 [1] : vector<8x8xf32> to vector<8xf32>
    %42 = vector.shape_cast %41 : vector<8xf32> to vector<8x1xf32>
    %43 = vector.broadcast %36 : vector<8x1xf32> to vector<8x8xf32>
    %44 = arith.cmpf oeq, %32, %43 : vector<8x8xf32>
    %cst_27 = arith.constant 1.000000e+30 : f32
    %45 = vector.broadcast %cst_27 : f32 to vector<8x8xf32>
    %46 = arith.select %44, %24, %45 : vector<8x8xi1>, vector<8x8xf32>
    %cst_28 = arith.constant dense<0x7F800000> : vector<8xf32>
    %47 = vector.multi_reduction <minimumf>, %46, %cst_28 [1] : vector<8x8xf32> to vector<8xf32>
    %48 = vector.shape_cast %47 : vector<8xf32> to vector<8x1xf32>
    %49 = arith.cmpf olt, %34, %10 : vector<8x1xf32>
    %50 = arith.cmpf ogt, %34, %10 : vector<8x1xf32>
    %51 = arith.minimumf %10, %42 : vector<8x1xf32>
    %52 = arith.select %50, %10, %51 : vector<8x1xi1>, vector<8x1xf32>
    %53 = arith.select %49, %42, %52 : vector<8x1xi1>, vector<8x1xf32>
    %54 = arith.cmpf olt, %36, %10 : vector<8x1xf32>
    %55 = arith.cmpf ogt, %36, %10 : vector<8x1xf32>
    %56 = arith.minimumf %10, %48 : vector<8x1xf32>
    %57 = arith.select %55, %10, %56 : vector<8x1xi1>, vector<8x1xf32>
    %58 = arith.select %54, %48, %57 : vector<8x1xi1>, vector<8x1xf32>
    %c0_29 = arith.constant 0 : index
    %c0_30 = arith.constant 0 : index
    %59 = vector.load %arg3[%c0_29, %c0_30] : memref<32x8xf32, #tpu.memory_space<vmem>>, vector<32x8xf32>
    %cst_31 = arith.constant dense<0.000000e+00> : vector<8x8xf32>
    %60 = tpu.matmul %0, %59, %cst_31 {dimension_numbers = #tpu.dot_dimension_numbers<[1], [0], [0], [1], [0, 0, 1, 1], [], []>} : vector<8x32xf32>, vector<32x8xf32>, vector<8x8xf32> -> vector<8x8xf32>
    %c0_32 = arith.constant 0 : index
    %c0_33 = arith.constant 0 : index
    %61 = vector.load %arg4[%c0_32, %c0_33] : memref<32x8xf32, #tpu.memory_space<vmem>>, vector<32x8xf32>
    %cst_34 = arith.constant dense<0.000000e+00> : vector<8x8xf32>
    %62 = tpu.matmul %1, %61, %cst_34 {dimension_numbers = #tpu.dot_dimension_numbers<[1], [0], [0], [1], [0, 0, 1, 1], [], []>} : vector<8x32xf32>, vector<32x8xf32>, vector<8x8xf32> -> vector<8x8xf32>
    %c0_35 = arith.constant 0 : index
    %c0_36 = arith.constant 0 : index
    %63 = vector.load %arg5[%c0_35, %c0_36] : memref<1x8xf32, #tpu.memory_space<vmem>>, vector<1x8xf32>
    %64 = vector.broadcast %2 : vector<8x1xf32> to vector<8x8xf32>
    %65 = vector.broadcast %63 : vector<1x8xf32> to vector<8x8xf32>
    %66 = arith.addf %64, %65 : vector<8x8xf32>
    %67 = arith.addf %66, %60 : vector<8x8xf32>
    %c0_37 = arith.constant 0 : index
    %c0_38 = arith.constant 0 : index
    %68 = vector.load %arg6[%c0_37, %c0_38] : memref<1x8xf32, #tpu.memory_space<vmem>>, vector<1x8xf32>
    %69 = vector.broadcast %3 : vector<8x1xf32> to vector<8x8xf32>
    %70 = vector.broadcast %68 : vector<1x8xf32> to vector<8x8xf32>
    %71 = arith.addf %69, %70 : vector<8x8xf32>
    %72 = arith.addf %71, %62 : vector<8x8xf32>
    %c0_39 = arith.constant 0 : index
    %c0_40 = arith.constant 0 : index
    %73 = vector.load %arg10[%c0_39, %c0_40] : memref<1x8xi32, #tpu.memory_space<vmem>>, vector<1x8xi32>
    %c0_i32 = arith.constant 0 : i32
    %74 = vector.broadcast %c0_i32 : i32 to vector<8x8xi32>
    %75 = arith.addi %74, %9 : vector<8x8xi32>
    %76 = vector.broadcast %4 : vector<8x1xi32> to vector<8x8xi32>
    %77 = vector.broadcast %73 : vector<1x8xi32> to vector<8x8xi32>
    %78 = arith.cmpi eq, %76, %77 : vector<8x8xi32>
    %79 = arith.cmpi slt, %8, %75 : vector<8x8xi32>
    %80 = arith.andi %78, %79 : vector<8x8xi1>
    %81 = vector.broadcast %53 : vector<8x1xf32> to vector<8x8xf32>
    %82 = arith.subf %67, %81 : vector<8x8xf32>
    %cst_41 = arith.constant 0.000000e+00 : f32
    %83 = vector.broadcast %cst_41 : f32 to vector<8x8xf32>
    %84 = arith.maximumf %82, %83 : vector<8x8xf32>
    %85 = math.absf %82 : vector<8x8xf32>
    %cst_42 = arith.constant 0.000000e+00 : f32
    %86 = vector.broadcast %cst_42 : f32 to vector<8x8xf32>
    %87 = arith.subf %86, %85 : vector<8x8xf32>
    %88 = math.exp %87 : vector<8x8xf32>
    %89 = math.log1p %88 : vector<8x8xf32>
    %90 = arith.addf %84, %89 : vector<8x8xf32>
    %cst_43 = arith.constant 0.000000e+00 : f32
    %91 = vector.broadcast %cst_43 : f32 to vector<8x8xf32>
    %92 = arith.select %80, %90, %91 : vector<8x8xi1>, vector<8x8xf32>
    %93 = vector.shape_cast %92 : vector<8x8xf32> to vector<1x8x8xf32>
    %cst_44 = arith.constant dense<0.000000e+00> : vector<1xf32>
    %94 = vector.multi_reduction <add>, %93, %cst_44 [1, 2] : vector<1x8x8xf32> to vector<1xf32>
    %95 = vector.shape_cast %94 : vector<1xf32> to vector<1x1x1xf32>
    %96 = vector.extract %95[0, 0, 0] : f32 from vector<1x1x1xf32>
    %cst_45 = arith.constant 0.000000e+00 : f32
    %97 = arith.addf %cst_45, %96 : f32
    %98 = vector.broadcast %58 : vector<8x1xf32> to vector<8x8xf32>
    %99 = arith.subf %72, %98 : vector<8x8xf32>
    %cst_46 = arith.constant 0.000000e+00 : f32
    %100 = vector.broadcast %cst_46 : f32 to vector<8x8xf32>
    %101 = arith.maximumf %99, %100 : vector<8x8xf32>
    %102 = math.absf %99 : vector<8x8xf32>
    %cst_47 = arith.constant 0.000000e+00 : f32
    %103 = vector.broadcast %cst_47 : f32 to vector<8x8xf32>
    %104 = arith.subf %103, %102 : vector<8x8xf32>
    %105 = math.exp %104 : vector<8x8xf32>
    %106 = math.log1p %105 : vector<8x8xf32>
    %107 = arith.addf %101, %106 : vector<8x8xf32>
    %cst_48 = arith.constant 0.000000e+00 : f32
    %108 = vector.broadcast %cst_48 : f32 to vector<8x8xf32>
    %109 = arith.select %80, %107, %108 : vector<8x8xi1>, vector<8x8xf32>
    %110 = vector.shape_cast %109 : vector<8x8xf32> to vector<1x8x8xf32>
    %cst_49 = arith.constant dense<0.000000e+00> : vector<1xf32>
    %111 = vector.multi_reduction <add>, %110, %cst_49 [1, 2] : vector<1x8x8xf32> to vector<1xf32>
    %112 = vector.shape_cast %111 : vector<1xf32> to vector<1x1x1xf32>
    %113 = vector.extract %112[0, 0, 0] : f32 from vector<1x1x1xf32>
    %cst_50 = arith.constant 0.000000e+00 : f32
    %114 = arith.addf %cst_50, %113 : f32
    %115 = tpu.iota {dimensions = array<i32: 0>} : vector<8x128xi32>
    %c0_i32_51 = arith.constant 0 : i32
    %116 = vector.broadcast %c0_i32_51 : i32 to vector<8x128xi32>
    %117 = arith.cmpi eq, %115, %116 : vector<8x128xi32>
    %c1_i32 = arith.constant 1 : i32
    %118 = vector.broadcast %c1_i32 : i32 to vector<8x128xi32>
    %119 = arith.cmpi eq, %115, %118 : vector<8x128xi32>
    %cst_52 = arith.constant 0.000000e+00 : f32
    %120 = vector.broadcast %114 : f32 to vector<8x128xf32>
    %121 = vector.broadcast %cst_52 : f32 to vector<8x128xf32>
    %122 = arith.select %119, %120, %121 : vector<8x128xi1>, vector<8x128xf32>
    %123 = vector.broadcast %97 : f32 to vector<8x128xf32>
    %124 = arith.select %117, %123, %122 : vector<8x128xi1>, vector<8x128xf32>
    %c0_53 = arith.constant 0 : index
    %c0_54 = arith.constant 0 : index
    %125 = vector.load %arg11[%c0_53, %c0_54] : memref<8x128xf32, #tpu.memory_space<vmem>>, vector<8x128xf32>
    tpu.vector_store %arg11[%c0_53, %c0_54], %124 {strides = array<i32>} : memref<8x128xf32, #tpu.memory_space<vmem>>, vector<8x128xf32>,
    return
  }
  func.func @transform_0(%arg0: i32) -> (i32, i32) {
    %c0_i32 = arith.constant 0 : i32
    %c0_i32_0 = arith.constant 0 : i32
    return %arg0, %c0_i32 : i32, i32
  }
  func.func @transform_1(%arg0: i32) -> (i32, i32) {
    %c0_i32 = arith.constant 0 : i32
    %c0_i32_0 = arith.constant 0 : i32
    return %arg0, %c0_i32 : i32, i32
  }
  func.func @transform_2(%arg0: i32) -> (i32, i32) {
    %c0_i32 = arith.constant 0 : i32
    %c0_i32_0 = arith.constant 0 : i32
    %c0_i32_1 = arith.constant 0 : i32
    return %c0_i32, %c0_i32_0 : i32, i32
  }
  func.func @transform_3(%arg0: i32) -> (i32, i32) {
    %c0_i32 = arith.constant 0 : i32
    %c0_i32_0 = arith.constant 0 : i32
    %c0_i32_1 = arith.constant 0 : i32
    return %c0_i32, %c0_i32_0 : i32, i32
  }
  func.func @transform_4(%arg0: i32) -> (i32, i32) {
    %c0_i32 = arith.constant 0 : i32
    %c0_i32_0 = arith.constant 0 : i32
    %c0_i32_1 = arith.constant 0 : i32
    return %c0_i32, %c0_i32_0 : i32, i32
  }
  func.func @transform_5(%arg0: i32) -> (i32, i32) {
    %c0_i32 = arith.constant 0 : i32
    %c0_i32_0 = arith.constant 0 : i32
    %c0_i32_1 = arith.constant 0 : i32
    return %c0_i32, %c0_i32_0 : i32, i32
  }
  func.func @transform_6(%arg0: i32) -> (i32, i32) {
    %c0_i32 = arith.constant 0 : i32
    %c0_i32_0 = arith.constant 0 : i32
    return %arg0, %c0_i32 : i32, i32
  }
  func.func @transform_7(%arg0: i32) -> (i32, i32) {
    %c0_i32 = arith.constant 0 : i32
    %c0_i32_0 = arith.constant 0 : i32
    return %arg0, %c0_i32 : i32, i32
  }
  func.func @transform_8(%arg0: i32) -> (i32, i32) {
    %c0_i32 = arith.constant 0 : i32
    %c0_i32_0 = arith.constant 0 : i32
    return %arg0, %c0_i32 : i32, i32
  }
  func.func @transform_9(%arg0: i32) -> (i32, i32) {
    %c0_i32 = arith.constant 0 : i32
    %c0_i32_0 = arith.constant 0 : i32
    %c0_i32_1 = arith.constant 0 : i32
    return %c0_i32, %c0_i32_0 : i32, i32
  }
  func.func @transform_10(%arg0: i32) -> (i32, i32) {
    %c0_i32 = arith.constant 0 : i32
    %c0_i32_0 = arith.constant 0 : i32
    return %arg0, %c0_i32 : i32, i32
  }
}

</mosaic_0001>

<llo_original>
// kernel: tpu_custom_call.1
$region0: #{tpu_custom_call.1}
  #allocation0 [shape = 'u32[]', space=smem, size = 0x4, offset = 0x4, fixed_abs, tag = 'smem constant byte address 0x4 - core index']
  #allocation1 [shape = 'u32[72,128]{1,0:T(1,128)}', space=vmem, size = 0x9000, scoped, tag = 'internal scratch']
  %s0 = inlined_call_operand.vmem [shape: f32[8,32], index: 0, kind: input, shape index: {}]
  %s1 = inlined_call_operand.vmem [shape: f32[8,32], index: 1, kind: input, shape index: {}]
  %s2 = inlined_call_operand.vmem [shape: f32[32,8], index: 2, kind: input, shape index: {}]
  %s3 = inlined_call_operand.vmem [shape: f32[32,8], index: 3, kind: input, shape index: {}]
  %s4 = inlined_call_operand.vmem [shape: f32[1,8], index: 4, kind: input, shape index: {}]
  %s5 = inlined_call_operand.vmem [shape: f32[1,8], index: 5, kind: input, shape index: {}]
  %s6 = inlined_call_operand.vmem [shape: f32[8,1], index: 6, kind: input, shape index: {}]
  %s7 = inlined_call_operand.vmem [shape: f32[8,1], index: 7, kind: input, shape index: {}]
  %s8 = inlined_call_operand.vmem [shape: s32[8,1], index: 8, kind: input, shape index: {}]
  %s9 = inlined_call_operand.vmem [shape: s32[1,8], index: 9, kind: input, shape index: {}]
  %s10 = inlined_call_operand.hbm [shape: f32[8,128], index: 10, kind: output, shape index: {}]
  %s11 = sld [smem:[#allocation0]]
  $region50: #{tpu_custom_call.1} parent=0
    _
  %s13 = ssub.s32 1, %s11
  %s14 = scalar_select 0, %s13, %s11
  $region1: #{tpu_custom_call.1} parent=0
    #allocation2 [shape = 'u8[4096]{0}', space=vmem, size = 0x1000, scoped, tag = 'output window, operand 0, single buffered']
    #allocation3 [shape = 's32[1]{0}', space=sflag, size = 0x4, scoped, tag = 'scoped memory for tpu_custom_call.1']
    %15 = vsyncpa [#allocation3], 0
    // Predicated region
    $region2: #{tpu_custom_call.1} parent=1 // pred_check
      _
    $region3: #{tpu_custom_call.1} parent=1 // pred_check_branch
      %17 = sbr.rel (0) target = $region5
    $region4: #{tpu_custom_call.1} parent=1 // pred_region
      _
    $region5: #{tpu_custom_call.1} parent=1 // pred_fallthru
      _
    // Predicated region
    $region6: #{tpu_custom_call.1} parent=1 // pred_check
      _
    $region7: #{tpu_custom_call.1} parent=1 // pred_check_branch
      %19 = sbr.rel (0) target = $region9
    $region8: #{tpu_custom_call.1} parent=1 // pred_region
      _
    $region9: #{tpu_custom_call.1} parent=1 // pred_fallthru
      _
    // Predicated region
    $region10: #{tpu_custom_call.1} parent=1 // pred_check
      _
    $region11: #{tpu_custom_call.1} parent=1 // pred_check_branch
      %21 = sbr.rel (0) target = $region13
    $region12: #{tpu_custom_call.1} parent=1 // pred_region
      _
    $region13: #{tpu_custom_call.1} parent=1 // pred_fallthru
      _
    // Predicated region
    $region14: #{tpu_custom_call.1} parent=1 // pred_check
      _
    $region15: #{tpu_custom_call.1} parent=1 // pred_check_branch
      %23 = sbr.rel (0) target = $region17
    $region16: #{tpu_custom_call.1} parent=1 // pred_region
      _
    $region17: #{tpu_custom_call.1} parent=1 // pred_fallthru
      _
    // Predicated region
    $region18: #{tpu_custom_call.1} parent=1 // pred_check
      _
    $region19: #{tpu_custom_call.1} parent=1 // pred_check_branch
      %25 = sbr.rel (0) target = $region21
    $region20: #{tpu_custom_call.1} parent=1 // pred_region
      _
    $region21: #{tpu_custom_call.1} parent=1 // pred_fallthru
      _
    // Predicated region
    $region22: #{tpu_custom_call.1} parent=1 // pred_check
      _
    $region23: #{tpu_custom_call.1} parent=1 // pred_check_branch
      %27 = sbr.rel (0) target = $region25
    $region24: #{tpu_custom_call.1} parent=1 // pred_region
      _
    $region25: #{tpu_custom_call.1} parent=1 // pred_fallthru
      _
    // Predicated region
    $region26: #{tpu_custom_call.1} parent=1 // pred_check
      _
    $region27: #{tpu_custom_call.1} parent=1 // pred_check_branch
      %29 = sbr.rel (0) target = $region29
    $region28: #{tpu_custom_call.1} parent=1 // pred_region
      _
    $region29: #{tpu_custom_call.1} parent=1 // pred_fallthru
      _
    // Predicated region
    $region30: #{tpu_custom_call.1} parent=1 // pred_check
      _
    $region31: #{tpu_custom_call.1} parent=1 // pred_check_branch
      %31 = sbr.rel (0) target = $region33
    $region32: #{tpu_custom_call.1} parent=1 // pred_region
      _
    $region33: #{tpu_custom_call.1} parent=1 // pred_fallthru
      _
    // Predicated region
    $region34: #{tpu_custom_call.1} parent=1 // pred_check
      _
    $region35: #{tpu_custom_call.1} parent=1 // pred_check_branch
      %33 = sbr.rel (0) target = $region37
    $region36: #{tpu_custom_call.1} parent=1 // pred_region
      _
    $region37: #{tpu_custom_call.1} parent=1 // pred_fallthru
      _
    // Predicated region
    $region38: #{tpu_custom_call.1} parent=1 // pred_check
      _
    $region39: #{tpu_custom_call.1} parent=1 // pred_check_branch
      %35 = sbr.rel (0) target = $region41
    $region40: #{tpu_custom_call.1} parent=1 // pred_region
      _
    $region41: #{tpu_custom_call.1} parent=1 // pred_fallthru
      _
    %v36 = vld [vmem:[%s0] sm:$0xff]
    %v37 = vld [vmem:[%s1] sm:$0xff]
    %v38 = vld [vmem:[%s6] sm:$0xff]
    %v39 = vld [vmem:[%s7] sm:$0xff]
    %v40 = vld [vmem:[%s8] sm:$0xff]
    %s41 = smul.u32 0, 8
    %v42 = vlaneseq
    %v43 = vshrl.u32 %v42, 7
    %v44 = vstv %s41
    %v45 = vadd.s32 %v44, %v43
    %v46 = vlaneseq
    %v47 = vand.u32 %v46, 127
    %v48 = vld [vmem:[%s2] sm:$0xff]
    %v49 = vld [vmem:[%s2 + $0x8] sm:$0xff]
    %v50 = vld [vmem:[%s2 + $0x10] sm:$0xff]
    %v51 = vld [vmem:[%s2 + $0x18] sm:$0xff]
    %vm52 = vcmask 261120
    %v54 = vsel %vm52, %v36, 0
    %56 = vmatpush.msra.mxu0 0.0
    %57 = vmatpush.msra.mxu0 0.0
    %58 = vmatpush.msra.mxu0 0.0
    %59 = vmatpush.msra.mxu0 0.0
    %60 = vmatpush.msra.mxu0 0.0
    %61 = vmatpush.msra.mxu0 0.0
    %62 = vmatpush.msra.mxu0 0.0
    %63 = vmatpush.msra.mxu0 0.0
    %64 = vmatpush.msra.mxu0 0.0
    %65 = vmatpush.msra.mxu0 0.0
    %66 = vmatpush.msra.mxu0 0.0
    %67 = vmatpush.msra.mxu0 0.0
    %v68 = vand.u32 %v51, 4294901760
    %69 = vmatpush.msra.mxu0 %v68
    %v70 = vand.u32 %v50, 4294901760
    %71 = vmatpush.msra.mxu0 %v70
    %v72 = vand.u32 %v49, 4294901760
    %73 = vmatpush.msra.mxu0 %v72
    %v74 = vand.u32 %v48, 4294901760
    %75 = vmatpush.msra.mxu0 %v74
    %v76 = vand.u32 %v54, 4294901760
    %v77 = vsub.f32 %v54, %v76
    %v78 = vand.u32 %v77, 4294901760
    %v79 = vsub.f32 %v77, %v78
    %v80 = vand.u32 %v79, 4294901760
    %81 = vmatmul.f32.gmra.mxu0 %v80
    %v82 = vpop.f32.mrf.mxu0
    %v83 = vadd.f32 0.0, %v82
    %84 = vdwg.mxu0
    %85 = vmatpush.msra.mxu0 0.0
    %86 = vmatpush.msra.mxu0 0.0
    %87 = vmatpush.msra.mxu0 0.0
    %88 = vmatpush.msra.mxu0 0.0
    %89 = vmatpush.msra.mxu0 0.0
    %90 = vmatpush.msra.mxu0 0.0
    %91 = vmatpush.msra.mxu0 0.0
    %92 = vmatpush.msra.mxu0 0.0
    %93 = vmatpush.msra.mxu0 0.0
    %94 = vmatpush.msra.mxu0 0.0
    %95 = vmatpush.msra.mxu0 0.0
    %96 = vmatpush.msra.mxu0 0.0
    %v97 = vand.u32 %v51, 4294901760
    %v98 = vsub.f32 %v51, %v97
    %v99 = vand.u32 %v98, 4294901760
    %v100 = vsub.f32 %v98, %v99
    %v101 = vand.u32 %v100, 4294901760
    %102 = vmatpush.msra.mxu0 %v101
    %v103 = vand.u32 %v50, 4294901760
    %v104 = vsub.f32 %v50, %v103
    %v105 = vand.u32 %v104, 4294901760
    %v106 = vsub.f32 %v104, %v105
    %v107 = vand.u32 %v106, 4294901760
    %108 = vmatpush.msra.mxu0 %v107
    %v109 = vand.u32 %v49, 4294901760
    %v110 = vsub.f32 %v49, %v109
    %v111 = vand.u32 %v110, 4294901760
    %v112 = vsub.f32 %v110, %v111
    %v113 = vand.u32 %v112, 4294901760
    %114 = vmatpush.msra.mxu0 %v113
    %v115 = vand.u32 %v48, 4294901760
    %v116 = vsub.f32 %v48, %v115
    %v117 = vand.u32 %v116, 4294901760
    %v118 = vsub.f32 %v116, %v117
    %v119 = vand.u32 %v118, 4294901760
    %120 = vmatpush.msra.mxu0 %v119
    %v121 = vand.u32 %v54, 4294901760
    %122 = vmatmul.f32.gmra.mxu0 %v121
    %v123 = vpop.f32.mrf.mxu0
    %v124 = vadd.f32 %v83, %v123
    %125 = vdwg.mxu0
    %126 = vmatpush.msra.mxu0 0.0
    %127 = vmatpush.msra.mxu0 0.0
    %128 = vmatpush.msra.mxu0 0.0
    %129 = vmatpush.msra.mxu0 0.0
    %130 = vmatpush.msra.mxu0 0.0
    %131 = vmatpush.msra.mxu0 0.0
    %132 = vmatpush.msra.mxu0 0.0
    %133 = vmatpush.msra.mxu0 0.0
    %134 = vmatpush.msra.mxu0 0.0
    %135 = vmatpush.msra.mxu0 0.0
    %136 = vmatpush.msra.mxu0 0.0
    %137 = vmatpush.msra.mxu0 0.0
    %v138 = vand.u32 %v51, 4294901760
    %v139 = vsub.f32 %v51, %v138
    %140 = vmatpush.msra.mxu0 %v139
    %v141 = vand.u32 %v50, 4294901760
    %v142 = vsub.f32 %v50, %v141
    %143 = vmatpush.msra.mxu0 %v142
    %v144 = vand.u32 %v49, 4294901760
    %v145 = vsub.f32 %v49, %v144
    %146 = vmatpush.msra.mxu0 %v145
    %v147 = vand.u32 %v48, 4294901760
    %v148 = vsub.f32 %v48, %v147
    %149 = vmatpush.msra.mxu0 %v148
    %v150 = vand.u32 %v54, 4294901760
    %v151 = vsub.f32 %v54, %v150
    %152 = vmatmul.f32.gmra.mxu0 %v151
    %v153 = vpop.f32.mrf.mxu0
    %v154 = vadd.f32 %v124, %v153
    %155 = vdwg.mxu0
    %156 = vmatpush.msra.mxu0 0.0
    %157 = vmatpush.msra.mxu0 0.0
    %158 = vmatpush.msra.mxu0 0.0
    %159 = vmatpush.msra.mxu0 0.0
    %160 = vmatpush.msra.mxu0 0.0
    %161 = vmatpush.msra.mxu0 0.0
    %162 = vmatpush.msra.mxu0 0.0
    %163 = vmatpush.msra.mxu0 0.0
    %164 = vmatpush.msra.mxu0 0.0
    %165 = vmatpush.msra.mxu0 0.0
    %166 = vmatpush.msra.mxu0 0.0
    %167 = vmatpush.msra.mxu0 0.0
    %v168 = vand.u32 %v51, 4294901760
    %169 = vmatpush.msra.mxu0 %v168
    %v170 = vand.u32 %v50, 4294901760
    %171 = vmatpush.msra.mxu0 %v170
    %v172 = vand.u32 %v49, 4294901760
    %173 = vmatpush.msra.mxu0 %v172
    %v174 = vand.u32 %v48, 4294901760
    %175 = vmatpush.msra.mxu0 %v174
    %v176 = vand.u32 %v54, 4294901760
    %v177 = vsub.f32 %v54, %v176
    %v178 = vand.u32 %v177, 4294901760
    %179 = vmatmul.f32.gmra.mxu0 %v178
    %v180 = vpop.f32.mrf.mxu0
    %v181 = vadd.f32 %v154, %v180
    %182 = vdwg.mxu0
    %183 = vmatpush.msra.mxu0 0.0
    %184 = vmatpush.msra.mxu0 0.0
    %185 = vmatpush.msra.mxu0 0.0
    %186 = vmatpush.msra.mxu0 0.0
    %187 = vmatpush.msra.mxu0 0.0
    %188 = vmatpush.msra.mxu0 0.0
    %189 = vmatpush.msra.mxu0 0.0
    %190 = vmatpush.msra.mxu0 0.0
    %191 = vmatpush.msra.mxu0 0.0
    %192 = vmatpush.msra.mxu0 0.0
    %193 = vmatpush.msra.mxu0 0.0
    %194 = vmatpush.msra.mxu0 0.0
    %v195 = vand.u32 %v51, 4294901760
    %v196 = vsub.f32 %v51, %v195
    %v197 = vand.u32 %v196, 4294901760
    %198 = vmatpush.msra.mxu0 %v197
    %v199 = vand.u32 %v50, 4294901760
    %v200 = vsub.f32 %v50, %v199
    %v201 = vand.u32 %v200, 4294901760
    %202 = vmatpush.msra.mxu0 %v201
    %v203 = vand.u32 %v49, 4294901760
    %v204 = vsub.f32 %v49, %v203
    %v205 = vand.u32 %v204, 4294901760
    %206 = vmatpush.msra.mxu0 %v205
    %v207 = vand.u32 %v48, 4294901760
    %v208 = vsub.f32 %v48, %v207
    %v209 = vand.u32 %v208, 4294901760
    %210 = vmatpush.msra.mxu0 %v209
    %v211 = vand.u32 %v54, 4294901760
    %212 = vmatmul.f32.gmra.mxu0 %v211
    %v213 = vpop.f32.mrf.mxu0
    %v214 = vadd.f32 %v181, %v213
    %215 = vdwg.mxu0
    %216 = vmatpush.msra.mxu0 0.0
    %217 = vmatpush.msra.mxu0 0.0
    %218 = vmatpush.msra.mxu0 0.0
    %219 = vmatpush.msra.mxu0 0.0
    %220 = vmatpush.msra.mxu0 0.0
    %221 = vmatpush.msra.mxu0 0.0
    %222 = vmatpush.msra.mxu0 0.0
    %223 = vmatpush.msra.mxu0 0.0
    %224 = vmatpush.msra.mxu0 0.0
    %225 = vmatpush.msra.mxu0 0.0
    %226 = vmatpush.msra.mxu0 0.0
    %227 = vmatpush.msra.mxu0 0.0
    %v228 = vand.u32 %v51, 4294901760
    %229 = vmatpush.msra.mxu0 %v228
    %v230 = vand.u32 %v50, 4294901760
    %231 = vmatpush.msra.mxu0 %v230
    %v232 = vand.u32 %v49, 4294901760
    %233 = vmatpush.msra.mxu0 %v232
    %v234 = vand.u32 %v48, 4294901760
    %235 = vmatpush.msra.mxu0 %v234
    %v236 = vand.u32 %v54, 4294901760
    %237 = vmatmul.f32.gmra.mxu0 %v236
    %v238 = vpop.f32.mrf.mxu0
    %v239 = vadd.f32 %v214, %v238
    %240 = vdwg.mxu0
    %v241 = vld [vmem:[%s3] sm:$0xff]
    %v242 = vld [vmem:[%s3 + $0x8] sm:$0xff]
    %v243 = vld [vmem:[%s3 + $0x10] sm:$0xff]
    %v244 = vld [vmem:[%s3 + $0x18] sm:$0xff]
    %v246 = vsel %vm52, %v37, 0
    %248 = vmatpush.msra.mxu0 0.0
    %249 = vmatpush.msra.mxu0 0.0
    %250 = vmatpush.msra.mxu0 0.0
    %251 = vmatpush.msra.mxu0 0.0
    %252 = vmatpush.msra.mxu0 0.0
    %253 = vmatpush.msra.mxu0 0.0
    %254 = vmatpush.msra.mxu0 0.0
    %255 = vmatpush.msra.mxu0 0.0
    %256 = vmatpush.msra.mxu0 0.0
    %257 = vmatpush.msra.mxu0 0.0
    %258 = vmatpush.msra.mxu0 0.0
    %259 = vmatpush.msra.mxu0 0.0
    %v260 = vand.u32 %v244, 4294901760
    %261 = vmatpush.msra.mxu0 %v260
    %v262 = vand.u32 %v243, 4294901760
    %263 = vmatpush.msra.mxu0 %v262
    %v264 = vand.u32 %v242, 4294901760
    %265 = vmatpush.msra.mxu0 %v264
    %v266 = vand.u32 %v241, 4294901760
    %267 = vmatpush.msra.mxu0 %v266
    %v268 = vand.u32 %v246, 4294901760
    %v269 = vsub.f32 %v246, %v268
    %v270 = vand.u32 %v269, 4294901760
    %v271 = vsub.f32 %v269, %v270
    %v272 = vand.u32 %v271, 4294901760
    %273 = vmatmul.f32.gmra.mxu0 %v272
    %v274 = vpop.f32.mrf.mxu0
    %v275 = vadd.f32 0.0, %v274
    %276 = vdwg.mxu0
    %277 = vmatpush.msra.mxu0 0.0
    %278 = vmatpush.msra.mxu0 0.0
    %279 = vmatpush.msra.mxu0 0.0
    %280 = vmatpush.msra.mxu0 0.0
    %281 = vmatpush.msra.mxu0 0.0
    %282 = vmatpush.msra.mxu0 0.0
    %283 = vmatpush.msra.mxu0 0.0
    %284 = vmatpush.msra.mxu0 0.0
    %285 = vmatpush.msra.mxu0 0.0
    %286 = vmatpush.msra.mxu0 0.0
    %287 = vmatpush.msra.mxu0 0.0
    %288 = vmatpush.msra.mxu0 0.0
    %v289 = vand.u32 %v244, 4294901760
    %v290 = vsub.f32 %v244, %v289
    %v291 = vand.u32 %v290, 4294901760
    %v292 = vsub.f32 %v290, %v291
    %v293 = vand.u32 %v292, 4294901760
    %294 = vmatpush.msra.mxu0 %v293
    %v295 = vand.u32 %v243, 4294901760
    %v296 = vsub.f32 %v243, %v295
    %v297 = vand.u32 %v296, 4294901760
    %v298 = vsub.f32 %v296, %v297
    %v299 = vand.u32 %v298, 4294901760
    %300 = vmatpush.msra.mxu0 %v299
    %v301 = vand.u32 %v242, 4294901760
    %v302 = vsub.f32 %v242, %v301
    %v303 = vand.u32 %v302, 4294901760
    %v304 = vsub.f32 %v302, %v303
    %v305 = vand.u32 %v304, 4294901760
    %306 = vmatpush.msra.mxu0 %v305
    %v307 = vand.u32 %v241, 4294901760
    %v308 = vsub.f32 %v241, %v307
    %v309 = vand.u32 %v308, 4294901760
    %v310 = vsub.f32 %v308, %v309
    %v311 = vand.u32 %v310, 4294901760
    %312 = vmatpush.msra.mxu0 %v311
    %v313 = vand.u32 %v246, 4294901760
    %314 = vmatmul.f32.gmra.mxu0 %v313
    %v315 = vpop.f32.mrf.mxu0
    %v316 = vadd.f32 %v275, %v315
    %317 = vdwg.mxu0
    %318 = vmatpush.msra.mxu0 0.0
    %319 = vmatpush.msra.mxu0 0.0
    %320 = vmatpush.msra.mxu0 0.0
    %321 = vmatpush.msra.mxu0 0.0
    %322 = vmatpush.msra.mxu0 0.0
    %323 = vmatpush.msra.mxu0 0.0
    %324 = vmatpush.msra.mxu0 0.0
    %325 = vmatpush.msra.mxu0 0.0
    %326 = vmatpush.msra.mxu0 0.0
    %327 = vmatpush.msra.mxu0 0.0
    %328 = vmatpush.msra.mxu0 0.0
    %329 = vmatpush.msra.mxu0 0.0
    %v330 = vand.u32 %v244, 4294901760
    %v331 = vsub.f32 %v244, %v330
    %332 = vmatpush.msra.mxu0 %v331
    %v333 = vand.u32 %v243, 4294901760
    %v334 = vsub.f32 %v243, %v333
    %335 = vmatpush.msra.mxu0 %v334
    %v336 = vand.u32 %v242, 4294901760
    %v337 = vsub.f32 %v242, %v336
    %338 = vmatpush.msra.mxu0 %v337
    %v339 = vand.u32 %v241, 4294901760
    %v340 = vsub.f32 %v241, %v339
    %341 = vmatpush.msra.mxu0 %v340
    %v342 = vand.u32 %v246, 4294901760
    %v343 = vsub.f32 %v246, %v342
    %344 = vmatmul.f32.gmra.mxu0 %v343
    %v345 = vpop.f32.mrf.mxu0
    %v346 = vadd.f32 %v316, %v345
    %347 = vdwg.mxu0
    %348 = vmatpush.msra.mxu0 0.0
    %349 = vmatpush.msra.mxu0 0.0
    %350 = vmatpush.msra.mxu0 0.0
    %351 = vmatpush.msra.mxu0 0.0
    %352 = vmatpush.msra.mxu0 0.0
    %353 = vmatpush.msra.mxu0 0.0
    %354 = vmatpush.msra.mxu0 0.0
    %355 = vmatpush.msra.mxu0 0.0
    %356 = vmatpush.msra.mxu0 0.0
    %357 = vmatpush.msra.mxu0 0.0
    %358 = vmatpush.msra.mxu0 0.0
    %359 = vmatpush.msra.mxu0 0.0
    %v360 = vand.u32 %v244, 4294901760
    %361 = vmatpush.msra.mxu0 %v360
    %v362 = vand.u32 %v243, 4294901760
    %363 = vmatpush.msra.mxu0 %v362
    %v364 = vand.u32 %v242, 4294901760
    %365 = vmatpush.msra.mxu0 %v364
    %v366 = vand.u32 %v241, 4294901760
    %367 = vmatpush.msra.mxu0 %v366
    %v368 = vand.u32 %v246, 4294901760
    %v369 = vsub.f32 %v246, %v368
    %v370 = vand.u32 %v369, 4294901760
    %371 = vmatmul.f32.gmra.mxu0 %v370
    %v372 = vpop.f32.mrf.mxu0
    %v373 = vadd.f32 %v346, %v372
    %374 = vdwg.mxu0
    %375 = vmatpush.msra.mxu0 0.0
    %376 = vmatpush.msra.mxu0 0.0
    %377 = vmatpush.msra.mxu0 0.0
    %378 = vmatpush.msra.mxu0 0.0
    %379 = vmatpush.msra.mxu0 0.0
    %380 = vmatpush.msra.mxu0 0.0
    %381 = vmatpush.msra.mxu0 0.0
    %382 = vmatpush.msra.mxu0 0.0
    %383 = vmatpush.msra.mxu0 0.0
    %384 = vmatpush.msra.mxu0 0.0
    %385 = vmatpush.msra.mxu0 0.0
    %386 = vmatpush.msra.mxu0 0.0
    %v387 = vand.u32 %v244, 4294901760
    %v388 = vsub.f32 %v244, %v387
    %v389 = vand.u32 %v388, 4294901760
    %390 = vmatpush.msra.mxu0 %v389
    %v391 = vand.u32 %v243, 4294901760
    %v392 = vsub.f32 %v243, %v391
    %v393 = vand.u32 %v392, 4294901760
    %394 = vmatpush.msra.mxu0 %v393
    %v395 = vand.u32 %v242, 4294901760
    %v396 = vsub.f32 %v242, %v395
    %v397 = vand.u32 %v396, 4294901760
    %398 = vmatpush.msra.mxu0 %v397
    %v399 = vand.u32 %v241, 4294901760
    %v400 = vsub.f32 %v241, %v399
    %v401 = vand.u32 %v400, 4294901760
    %402 = vmatpush.msra.mxu0 %v401
    %v403 = vand.u32 %v246, 4294901760
    %404 = vmatmul.f32.gmra.mxu0 %v403
    %v405 = vpop.f32.mrf.mxu0
    %v406 = vadd.f32 %v373, %v405
    %407 = vdwg.mxu0
    %408 = vmatpush.msra.mxu0 0.0
    %409 = vmatpush.msra.mxu0 0.0
    %410 = vmatpush.msra.mxu0 0.0
    %411 = vmatpush.msra.mxu0 0.0
    %412 = vmatpush.msra.mxu0 0.0
    %413 = vmatpush.msra.mxu0 0.0
    %414 = vmatpush.msra.mxu0 0.0
    %415 = vmatpush.msra.mxu0 0.0
    %416 = vmatpush.msra.mxu0 0.0
    %417 = vmatpush.msra.mxu0 0.0
    %418 = vmatpush.msra.mxu0 0.0
    %419 = vmatpush.msra.mxu0 0.0
    %v420 = vand.u32 %v244, 4294901760
    %421 = vmatpush.msra.mxu0 %v420
    %v422 = vand.u32 %v243, 4294901760
    %423 = vmatpush.msra.mxu0 %v422
    %v424 = vand.u32 %v242, 4294901760
    %425 = vmatpush.msra.mxu0 %v424
    %v426 = vand.u32 %v241, 4294901760
    %427 = vmatpush.msra.mxu0 %v426
    %v428 = vand.u32 %v246, 4294901760
    %429 = vmatmul.f32.gmra.mxu0 %v428
    %v430 = vpop.f32.mrf.mxu0
    %v431 = vadd.f32 %v406, %v430
    %432 = vdwg.mxu0
    %v433 = vld [vmem:[%s4] sm:$0x1]
    %435 = vset.pattern.permute.xlu0 0
    %436 = vperm.xlu0 %435, %v38
    %v437 = vpop.permute.xlu0 %436
    %v440 = vperm.slane %v433, 0
    %v442 = vadd.f32 %v437, %v440
    %v443 = vadd.f32 %v442, %v239
    %v444 = vld [vmem:[%s5] sm:$0x1]
    %446 = vset.pattern.permute.xlu0 0
    %447 = vperm.xlu0 %446, %v39
    %v448 = vpop.permute.xlu0 %447
    %v451 = vperm.slane %v444, 0
    %v453 = vadd.f32 %v448, %v451
    %v454 = vadd.f32 %v453, %v431
    %v455 = vld [vmem:[%s9] sm:$0x1]
    %456 = vset.pattern.permute.xlu0 0
    %457 = vperm.xlu0 %456, %v40
    %v458 = vpop.permute.xlu0 %457
    %v459 = vperm.slane %v455, 0
    %vm460 = vcmp.ne.s32.totalorder %v458, %v459
    %v461 = vsel %vm460, %v454, 1e+30
    %v462 = vsel %vm460, %v443, 1e+30
    %vm463 = vcmask 64512
    %v464 = vsel %vm463, %v461, inf
    %465 = vmin.xlane.f32.xlu0 %v464
    %v466 = vpop.xlane.xlu0 %465
    %v467 = vsel %vm463, %v462, inf
    %468 = vmin.xlane.f32.xlu0 %v467
    %v469 = vpop.xlane.xlu0 %468
    %vm470 = vcmp.eq.f32.partialorder %v461, %v466
    %v471 = vsel %vm470, %v443, 1e+30
    %v472 = vsel %vm463, %v471, inf
    %473 = vmin.xlane.f32.xlu0 %v472
    %v474 = vpop.xlane.xlu0 %473
    %vm475 = vcmp.eq.f32.partialorder %v462, %v469
    %v476 = vsel %vm475, %v454, 1e+30
    %v477 = vsel %vm463, %v476, inf
    %478 = vmin.xlane.f32.xlu0 %v477
    %v479 = vpop.xlane.xlu0 %478
    %vm480 = vcmp.lt.f32.partialorder %v466, 1e+30
    %vm481 = vcmp.gt.f32.partialorder %v466, 1e+30
    %v482 = vmin.f32 %v474, 1e+30
    %v483 = vsel %vm481, 1e+30, %v482
    %v484 = vsel %vm480, %v474, %v483
    %vm485 = vcmp.lt.f32.partialorder %v469, 1e+30
    %vm486 = vcmp.gt.f32.partialorder %v469, 1e+30
    %v487 = vmin.f32 %v479, 1e+30
    %v488 = vsel %vm486, 1e+30, %v487
    %v489 = vsel %vm485, %v479, %v488
    %vm490 = vcmp.eq.s32.totalorder %v458, %v459
    %vm491 = vcmp.lt.s32.totalorder %v45, %v47
    %vm492 = vmand %vm490, %vm491
    %v493 = vsub.f32 %v443, %v484
    %v494 = vmax.f32 %v493, 0.0
    %v495 = vand.u32 2147483647, %v493
    %v496 = vsub.f32 0.0, %v495
    %v497 = vmul.f32 %v496, 1.442695
    %v498 = vpow.pop %v497
    %v499 = vadd.f32 %v498, 1.0
    %v500 = vlog2.pop %v499
    %v501 = vmul.f32 %v500, 0.6931472
    %v502 = vmul.f32 -0.5, %v498
    %v503 = vadd.f32 %v502, 1.0
    %v504 = vmul.f32 %v503, %v498
    %v505 = vand.u32 2147483647, %v498
    %vm506 = vcmp.lt.f32.partialorder %v505, 0.0004427343
    %v507 = vsel %vm506, %v504, %v501
    %v508 = vadd.f32 %v494, %v507
    %v509 = vsel %vm492, %v508, 0.0
    %v510 = vsel %vm463, %v509, 0.0
    %511 = vadd.xlane.f32.xlu0 %v510
    %v512 = vpop.xlane.xlu0 %511
    %v513 = vrot.slane %v512, 4
    %v514 = vadd.f32 %v512, %v513
    %v515 = vrot.slane %v514, 2
    %v516 = vadd.f32 %v514, %v515
    %v517 = vrot.slane %v516, 1
    %v518 = vadd.f32 %v516, %v517
    %s519 = vtos %v518
    %s520 = sadd.f32 %s519, 0.0
    %v521 = vsub.f32 %v454, %v489
    %v522 = vmax.f32 %v521, 0.0
    %v523 = vand.u32 2147483647, %v521
    %v524 = vsub.f32 0.0, %v523
    %v525 = vmul.f32 %v524, 1.442695
    %v526 = vpow.pop %v525
    %v527 = vadd.f32 %v526, 1.0
    %v528 = vlog2.pop %v527
    %v529 = vmul.f32 %v528, 0.6931472
    %v530 = vmul.f32 -0.5, %v526
    %v531 = vadd.f32 %v530, 1.0
    %v532 = vmul.f32 %v531, %v526
    %v533 = vand.u32 2147483647, %v526
    %vm534 = vcmp.lt.f32.partialorder %v533, 0.0004427343
    %v535 = vsel %vm534, %v532, %v529
    %v536 = vadd.f32 %v522, %v535
    %v537 = vsel %vm492, %v536, 0.0
    %v538 = vsel %vm463, %v537, 0.0
    %539 = vadd.xlane.f32.xlu0 %v538
    %v540 = vpop.xlane.xlu0 %539
    %v541 = vrot.slane %v540, 4
    %v542 = vadd.f32 %v540, %v541
    %v543 = vrot.slane %v542, 2
    %v544 = vadd.f32 %v542, %v543
    %v545 = vrot.slane %v544, 1
    %v546 = vadd.f32 %v544, %v545
    %s547 = vtos %v546
    %s548 = sadd.f32 %s547, 0.0
    %vm549 = vcmp.eq.s32.totalorder %v43, 0
    %vm550 = vcmp.eq.s32.totalorder %v43, 1
    %v551 = vstv %s548
    %v552 = vsel %vm550, %v551, 0.0
    %v553 = vstv %s520
    %v554 = vsel %vm549, %v553, %v552
    %555 = vst [vmem:[#allocation2] sm:$0xff] %v554
    // Predicated region
    $region42: #{tpu_custom_call.1} parent=1 // pred_check
      _
    $region43: #{tpu_custom_call.1} parent=1 // pred_check_branch
      %557 = sbr.rel (0) target = $region45
    $region44: #{tpu_custom_call.1} parent=1 // pred_region
      %559 = vsyncadd [#allocation3], 0
      %s561 = sshll.u32 [#allocation2], 4
      %s562 = int_to_ptr.vmem [resolvable:$true] %s561
      %s563 = sshll.u32 %s10, 4
      %s564 = int_to_ptr.hbm [resolvable:$true] %s563
      %566 = dma.vmem_to_hbm [thread:$0]  %s562, 128, %s564, [#allocation3]
    $region45: #{tpu_custom_call.1} parent=1 // pred_fallthru
      _
    // Predicated region
    $region46: #{tpu_custom_call.1} parent=1 // pred_check
      _
    $region47: #{tpu_custom_call.1} parent=1 // pred_check_branch
      %568 = sbr.rel (0) target = $region49
    $region48: #{tpu_custom_call.1} parent=1 // pred_region
      %570 = dma.done [#allocation3], 128
    $region49: #{tpu_custom_call.1} parent=1 // pred_fallthru
      _
    %571 = vsyncpa [#allocation3], 1

// kernel: tpu_custom_call.1
$region0: #{tpu_custom_call.1}
  #allocation0 [shape = 'u32[]', space=smem, size = 0x4, offset = 0x4, fixed_abs, tag = 'smem constant byte address 0x4 - core index']
  #allocation1 [shape = 'u32[72,128]{1,0:T(1,128)}', space=vmem, size = 0x9000, scoped, tag = 'internal scratch']
  %s0 = inlined_call_operand.vmem [shape: f32[8,32], index: 0, kind: input, shape index: {}]
  %s1 = inlined_call_operand.vmem [shape: f32[8,32], index: 1, kind: input, shape index: {}]
  %s2 = inlined_call_operand.vmem [shape: f32[32,8], index: 2, kind: input, shape index: {}]
  %s3 = inlined_call_operand.vmem [shape: f32[32,8], index: 3, kind: input, shape index: {}]
  %s4 = inlined_call_operand.vmem [shape: f32[1,8], index: 4, kind: input, shape index: {}]
  %s5 = inlined_call_operand.vmem [shape: f32[1,8], index: 5, kind: input, shape index: {}]
  %s6 = inlined_call_operand.vmem [shape: f32[8,1], index: 6, kind: input, shape index: {}]
  %s7 = inlined_call_operand.vmem [shape: f32[8,1], index: 7, kind: input, shape index: {}]
  %s8 = inlined_call_operand.vmem [shape: s32[8,1], index: 8, kind: input, shape index: {}]
  %s9 = inlined_call_operand.vmem [shape: s32[1,8], index: 9, kind: input, shape index: {}]
  %s10 = inlined_call_operand.hbm [shape: f32[8,128], index: 10, kind: output, shape index: {}]
  %s11 = sld [smem:[#allocation0]]
  $region50: #{tpu_custom_call.1} parent=0
    _
  %s13 = ssub.s32 1, %s11
  %s14 = scalar_select 0, %s13, %s11
  $region1: #{tpu_custom_call.1} parent=0
    #allocation2 [shape = 'u8[4096]{0}', space=vmem, size = 0x1000, scoped, tag = 'output window, operand 0, single buffered']
    #allocation3 [shape = 's32[1]{0}', space=sflag, size = 0x4, scoped, tag = 'scoped memory for tpu_custom_call.1']
    %15 = vsyncpa [#allocation3], 0
    // Predicated region
    $region2: #{tpu_custom_call.1} parent=1 // pred_check
      _
    $region3: #{tpu_custom_call.1} parent=1 // pred_check_branch
      %17 = sbr.rel (0) target = $region5
    $region4: #{tpu_custom_call.1} parent=1 // pred_region
      _
    $region5: #{tpu_custom_call.1} parent=1 // pred_fallthru
      _
    // Predicated region
    $region6: #{tpu_custom_call.1} parent=1 // pred_check
      _
    $region7: #{tpu_custom_call.1} parent=1 // pred_check_branch
      %19 = sbr.rel (0) target = $region9
    $region8: #{tpu_custom_call.1} parent=1 // pred_region
      _
    $region9: #{tpu_custom_call.1} parent=1 // pred_fallthru
      _
    // Predicated region
    $region10: #{tpu_custom_call.1} parent=1 // pred_check
      _
    $region11: #{tpu_custom_call.1} parent=1 // pred_check_branch
      %21 = sbr.rel (0) target = $region13
    $region12: #{tpu_custom_call.1} parent=1 // pred_region
      _
    $region13: #{tpu_custom_call.1} parent=1 // pred_fallthru
      _
    // Predicated region
    $region14: #{tpu_custom_call.1} parent=1 // pred_check
      _
    $region15: #{tpu_custom_call.1} parent=1 // pred_check_branch
      %23 = sbr.rel (0) target = $region17
    $region16: #{tpu_custom_call.1} parent=1 // pred_region
      _
    $region17: #{tpu_custom_call.1} parent=1 // pred_fallthru
      _
    // Predicated region
    $region18: #{tpu_custom_call.1} parent=1 // pred_check
      _
    $region19: #{tpu_custom_call.1} parent=1 // pred_check_branch
      %25 = sbr.rel (0) target = $region21
    $region20: #{tpu_custom_call.1} parent=1 // pred_region
      _
    $region21: #{tpu_custom_call.1} parent=1 // pred_fallthru
      _
    // Predicated region
    $region22: #{tpu_custom_call.1} parent=1 // pred_check
      _
    $region23: #{tpu_custom_call.1} parent=1 // pred_check_branch
      %27 = sbr.rel (0) target = $region25
    $region24: #{tpu_custom_call.1} parent=1 // pred_region
      _
    $region25: #{tpu_custom_call.1} parent=1 // pred_fallthru
      _
    // Predicated region
    $region26: #{tpu_custom_call.1} parent=1 // pred_check
      _
    $region27: #{tpu_custom_call.1} parent=1 // pred_check_branch
      %29 = sbr.rel (0) target = $region29
    $region28: #{tpu_custom_call.1} parent=1 // pred_region
      _
    $region29: #{tpu_custom_call.1} parent=1 // pred_fallthru
      _
    // Predicated region
    $region30: #{tpu_custom_call.1} parent=1 // pred_check
      _
    $region31: #{tpu_custom_call.1} parent=1 // pred_check_branch
      %31 = sbr.rel (0) target = $region33
    $region32: #{tpu_custom_call.1} parent=1 // pred_region
      _
    $region33: #{tpu_custom_call.1} parent=1 // pred_fallthru
      _
    // Predicated region
    $region34: #{tpu_custom_call.1} parent=1 // pred_check
      _
    $region35: #{tpu_custom_call.1} parent=1 // pred_check_branch
      %33 = sbr.rel (0) target = $region37
    $region36: #{tpu_custom_call.1} parent=1 // pred_region
      _
    $region37: #{tpu_custom_call.1} parent=1 // pred_fallthru
      _
    // Predicated region
    $region38: #{tpu_custom_call.1} parent=1 // pred_check
      _
    $region39: #{tpu_custom_call.1} parent=1 // pred_check_branch
      %35 = sbr.rel (0) target = $region41
    $region40: #{tpu_custom_call.1} parent=1 // pred_region
      _
    $region41: #{tpu_custom_call.1} parent=1 // pred_fallthru
      _
    %v36 = vld [vmem:[%s0] sm:$0xff]
    %v37 = vld [vmem:[%s1] sm:$0xff]
    %v38 = vld [vmem:[%s6] sm:$0xff]
    %v39 = vld [vmem:[%s7] sm:$0xff]
    %v40 = vld [vmem:[%s8] sm:$0xff]
    %s41 = smul.u32 0, 8
    %v42 = vlaneseq
    %v43 = vshrl.u32 %v42, 7
    %v44 = vstv %s41
    %v45 = vadd.s32 %v44, %v43
    %v46 = vlaneseq
    %v47 = vand.u32 %v46, 127
    %v48 = vld [vmem:[%s2] sm:$0xff]
    %v49 = vld [vmem:[%s2 + $0x8] sm:$0xff]
    %v50 = vld [vmem:[%s2 + $0x10] sm:$0xff]
    %v51 = vld [vmem:[%s2 + $0x18] sm:$0xff]
    %vm52 = vcmask 261120
    %v54 = vsel %vm52, %v36, 0
    %56 = vmatpush.msra.mxu0 0.0
    %57 = vmatpush.msra.mxu0 0.0
    %58 = vmatpush.msra.mxu0 0.0
    %59 = vmatpush.msra.mxu0 0.0
    %60 = vmatpush.msra.mxu0 0.0
    %61 = vmatpush.msra.mxu0 0.0
    %62 = vmatpush.msra.mxu0 0.0
    %63 = vmatpush.msra.mxu0 0.0
    %64 = vmatpush.msra.mxu0 0.0
    %65 = vmatpush.msra.mxu0 0.0
    %66 = vmatpush.msra.mxu0 0.0
    %67 = vmatpush.msra.mxu0 0.0
    %68 = vmatpush.msra.mxu0 %v51
    %69 = vmatpush.msra.mxu0 %v50
    %70 = vmatpush.msra.mxu0 %v49
    %71 = vmatpush.msra.mxu0 %v48
    %72 = vmatmul.f32.gmra.mxu0 %v54
    %v73 = vpop.f32.mrf.mxu0
    %v74 = vadd.f32 0.0, %v73
    %75 = vdwg.mxu0
    %v76 = vld [vmem:[%s3] sm:$0xff]
    %v77 = vld [vmem:[%s3 + $0x8] sm:$0xff]
    %v78 = vld [vmem:[%s3 + $0x10] sm:$0xff]
    %v79 = vld [vmem:[%s3 + $0x18] sm:$0xff]
    %v81 = vsel %vm52, %v37, 0
    %83 = vmatpush.msra.mxu0 0.0
    %84 = vmatpush.msra.mxu0 0.0
    %85 = vmatpush.msra.mxu0 0.0
    %86 = vmatpush.msra.mxu0 0.0
    %87 = vmatpush.msra.mxu0 0.0
    %88 = vmatpush.msra.mxu0 0.0
    %89 = vmatpush.msra.mxu0 0.0
    %90 = vmatpush.msra.mxu0 0.0
    %91 = vmatpush.msra.mxu0 0.0
    %92 = vmatpush.msra.mxu0 0.0
    %93 = vmatpush.msra.mxu0 0.0
    %94 = vmatpush.msra.mxu0 0.0
    %95 = vmatpush.msra.mxu0 %v79
    %96 = vmatpush.msra.mxu0 %v78
    %97 = vmatpush.msra.mxu0 %v77
    %98 = vmatpush.msra.mxu0 %v76
    %99 = vmatmul.f32.gmra.mxu0 %v81
    %v100 = vpop.f32.mrf.mxu0
    %v101 = vadd.f32 0.0, %v100
    %102 = vdwg.mxu0
    %v103 = vld [vmem:[%s4] sm:$0x1]
    %105 = vset.pattern.permute.xlu0 0
    %106 = vperm.xlu0 %105, %v38
    %v107 = vpop.permute.xlu0 %106
    %v110 = vperm.slane %v103, 0
    %v112 = vadd.f32 %v107, %v110
    %v113 = vadd.f32 %v112, %v74
    %v114 = vld [vmem:[%s5] sm:$0x1]
    %116 = vset.pattern.permute.xlu0 0
    %117 = vperm.xlu0 %116, %v39
    %v118 = vpop.permute.xlu0 %117
    %v121 = vperm.slane %v114, 0
    %v123 = vadd.f32 %v118, %v121
    %v124 = vadd.f32 %v123, %v101
    %v125 = vld [vmem:[%s9] sm:$0x1]
    %126 = vset.pattern.permute.xlu0 0
    %127 = vperm.xlu0 %126, %v40
    %v128 = vpop.permute.xlu0 %127
    %v129 = vperm.slane %v125, 0
    %vm130 = vcmp.ne.s32.totalorder %v128, %v129
    %v131 = vsel %vm130, %v124, 1e+30
    %v132 = vsel %vm130, %v113, 1e+30
    %vm133 = vcmask 64512
    %v134 = vsel %vm133, %v131, inf
    %135 = vmin.xlane.f32.xlu0 %v134
    %v136 = vpop.xlane.xlu0 %135
    %v137 = vsel %vm133, %v132, inf
    %138 = vmin.xlane.f32.xlu0 %v137
    %v139 = vpop.xlane.xlu0 %138
    %vm140 = vcmp.eq.f32.partialorder %v131, %v136
    %v141 = vsel %vm140, %v113, 1e+30
    %v142 = vsel %vm133, %v141, inf
    %143 = vmin.xlane.f32.xlu0 %v142
    %v144 = vpop.xlane.xlu0 %143
    %vm145 = vcmp.eq.f32.partialorder %v132, %v139
    %v146 = vsel %vm145, %v124, 1e+30
    %v147 = vsel %vm133, %v146, inf
    %148 = vmin.xlane.f32.xlu0 %v147
    %v149 = vpop.xlane.xlu0 %148
    %vm150 = vcmp.lt.f32.partialorder %v136, 1e+30
    %vm151 = vcmp.gt.f32.partialorder %v136, 1e+30
    %v152 = vmin.f32 %v144, 1e+30
    %v153 = vsel %vm151, 1e+30, %v152
    %v154 = vsel %vm150, %v144, %v153
    %vm155 = vcmp.lt.f32.partialorder %v139, 1e+30
    %vm156 = vcmp.gt.f32.partialorder %v139, 1e+30
    %v157 = vmin.f32 %v149, 1e+30
    %v158 = vsel %vm156, 1e+30, %v157
    %v159 = vsel %vm155, %v149, %v158
    %vm160 = vcmp.eq.s32.totalorder %v128, %v129
    %vm161 = vcmp.lt.s32.totalorder %v45, %v47
    %vm162 = vmand %vm160, %vm161
    %v163 = vsub.f32 %v113, %v154
    %v164 = vmax.f32 %v163, 0.0
    %v165 = vand.u32 2147483647, %v163
    %v166 = vsub.f32 0.0, %v165
    %v167 = vmul.f32 %v166, 1.442695
    %v168 = vpow.pop %v167
    %v169 = vadd.f32 %v168, 1.0
    %v170 = vlog2.pop %v169
    %v171 = vmul.f32 %v170, 0.6931472
    %v172 = vmul.f32 -0.5, %v168
    %v173 = vadd.f32 %v172, 1.0
    %v174 = vmul.f32 %v173, %v168
    %v175 = vand.u32 2147483647, %v168
    %vm176 = vcmp.lt.f32.partialorder %v175, 0.0004427343
    %v177 = vsel %vm176, %v174, %v171
    %v178 = vadd.f32 %v164, %v177
    %v179 = vsel %vm162, %v178, 0.0
    %v180 = vsel %vm133, %v179, 0.0
    %181 = vadd.xlane.f32.xlu0 %v180
    %v182 = vpop.xlane.xlu0 %181
    %v183 = vrot.slane %v182, 4
    %v184 = vadd.f32 %v182, %v183
    %v185 = vrot.slane %v184, 2
    %v186 = vadd.f32 %v184, %v185
    %v187 = vrot.slane %v186, 1
    %v188 = vadd.f32 %v186, %v187
    %s189 = vtos %v188
    %s190 = sadd.f32 %s189, 0.0
    %v191 = vsub.f32 %v124, %v159
    %v192 = vmax.f32 %v191, 0.0
    %v193 = vand.u32 2147483647, %v191
    %v194 = vsub.f32 0.0, %v193
    %v195 = vmul.f32 %v194, 1.442695
    %v196 = vpow.pop %v195
    %v197 = vadd.f32 %v196, 1.0
    %v198 = vlog2.pop %v197
    %v199 = vmul.f32 %v198, 0.6931472
    %v200 = vmul.f32 -0.5, %v196
    %v201 = vadd.f32 %v200, 1.0
    %v202 = vmul.f32 %v201, %v196
    %v203 = vand.u32 2147483647, %v196
    %vm204 = vcmp.lt.f32.partialorder %v203, 0.0004427343
    %v205 = vsel %vm204, %v202, %v199
    %v206 = vadd.f32 %v192, %v205
    %v207 = vsel %vm162, %v206, 0.0
    %v208 = vsel %vm133, %v207, 0.0
    %209 = vadd.xlane.f32.xlu0 %v208
    %v210 = vpop.xlane.xlu0 %209
    %v211 = vrot.slane %v210, 4
    %v212 = vadd.f32 %v210, %v211
    %v213 = vrot.slane %v212, 2
    %v214 = vadd.f32 %v212, %v213
    %v215 = vrot.slane %v214, 1
    %v216 = vadd.f32 %v214, %v215
    %s217 = vtos %v216
    %s218 = sadd.f32 %s217, 0.0
    %vm219 = vcmp.eq.s32.totalorder %v43, 0
    %vm220 = vcmp.eq.s32.totalorder %v43, 1
    %v221 = vstv %s218
    %v222 = vsel %vm220, %v221, 0.0
    %v223 = vstv %s190
    %v224 = vsel %vm219, %v223, %v222
    %225 = vst [vmem:[#allocation2] sm:$0xff] %v224
    // Predicated region
    $region42: #{tpu_custom_call.1} parent=1 // pred_check
      _
    $region43: #{tpu_custom_call.1} parent=1 // pred_check_branch
      %227 = sbr.rel (0) target = $region45
    $region44: #{tpu_custom_call.1} parent=1 // pred_region
      %229 = vsyncadd [#allocation3], 0
      %s231 = sshll.u32 [#allocation2], 4
      %s232 = int_to_ptr.vmem [resolvable:$true] %s231
      %s233 = sshll.u32 %s10, 4
      %s234 = int_to_ptr.hbm [resolvable:$true] %s233
      %236 = dma.vmem_to_hbm [thread:$0]  %s232, 128, %s234, [#allocation3]
    $region45: #{tpu_custom_call.1} parent=1 // pred_fallthru
      _
    // Predicated region
    $region46: #{tpu_custom_call.1} parent=1 // pred_check
      _
    $region47: #{tpu_custom_call.1} parent=1 // pred_check_branch
      %238 = sbr.rel (0) target = $region49
    $region48: #{tpu_custom_call.1} parent=1 // pred_region
      %240 = dma.done [#allocation3], 128
    $region49: #{tpu_custom_call.1} parent=1 // pred_fallthru
      _
    %241 = vsyncpa [#allocation3], 1

</llo_original>
